<compile_context>
chip_gen: v6e
topology: v6e:2x2x1
jax: 0.10.0
libtpu: 0.0.40
codegen_flags: <defaults>
</compile_context>

<pallas_src>
from typing import NamedTuple

import jax
import jax.numpy as jnp
import numpy as np
from jax.experimental import pallas as pl
from jax.experimental.pallas import tpu as pltpu

NEG_INF = float("-inf")
LANE = 128


def _round_up(x, m):
    return ((x + m - 1) // m) * m


def _vmem_budget_and_limit():
    """Tile budget / scoped-VMEM limit derived from the chip's VMEM capacity."""
    try:
        cap = int(pltpu.get_tpu_info().vmem_capacity_bytes)
    except Exception:
        cap = 64 << 20                       # conservative fallback (v7x per-TC capacity)
    limit = min(cap // 2, 64 << 20)          # v5e/v6e: 64 MiB, v7x: 32 MiB
    budget = (3 * limit) // 8                # ~24 MiB on v5e/v6e, ~12 MiB on v7x
    return budget, limit


def _pick_batch_tile(b_pad, io_row, tmp_row, fixed, budget):
    """Largest batch tile (multiple of 8, divides b_pad) whose double-buffered I/O blocks
    plus f32 temporaries plus the resident W fit under the budget."""
    tiles = [t for t in (1024, 512, 256, 128, 64, 32, 16, 8) if t <= b_pad and b_pad % t == 0]
    tb = tiles[-1]
    for t in tiles:
        if fixed + t * (2 * io_row + tmp_row) <= budget:
            tb = t
            break
    # v7x megacore: dimension_semantics=("parallel",) only helps with >= 2 grid steps.
    while b_pad // tb < 2 and tb >= 16 and b_pad % (tb // 2) == 0:
        tb //= 2
    return tb


class AttentionState(NamedTuple):
    """Carried attention state (replaces prev_e_enc)."""
    hist: jax.Array   # (T_max, B_pad, S_pad) f32, rows [0, t) hold the alignment scores
    m: jax.Array      # (B_pad, S_pad) f32  running per-column max (0 where masked)
    d: jax.Array      # (B_pad, S_pad) f32  running sum_j exp(hist_j - m) (0 where masked)
    t: jax.Array      # () int32            number of valid history rows


# --------------------------------------------------------------------------- kernel math

def _scores(mask, h_dec, h_enc, w):
    """e[b, s] = h_dec[b] @ W @ h_enc[b, s]  (two MXU contractions), masked to -inf."""
    u = jnp.dot(h_dec, w, preferred_element_type=jnp.float32)            # (TB, D2) f32
    u = u.astype(h_enc.dtype)                                            # MXU operands in h_enc dtype
    # 3-D batched einsum (q == 1) is the known-good Mosaic lowering here; the middle
    # singleton keeps S_pad on the lane axis.  Revisit the M=1 MXU pushes with a bundle
    # dump only if they become the limiter now that the history traffic is gone.
    e = jnp.einsum('bqk,bsk->bqs', u[:, None, :], h_enc,
                   preferred_element_type=jnp.float32)[:, 0, :]          # (TB, S_pad) f32
    return jnp.where(mask, e, NEG_INF)


def _context(at, h_enc, out_dtype):
    ctx = jnp.einsum('bqs,bsk->bqk', at.astype(h_enc.dtype)[:, None, :], h_enc,
                     preferred_element_type=jnp.float32)[:, 0, :]        # (TB, D2) f32
    return ctx.astype(out_dtype)


# --------------------------------------------------------------------------- kernels

def attention_first_kernel(t_ref, mask_ref, h_dec_ref, h_enc_ref, w_ref, hist_hbm_ref,
                           ctx_ref, at_ref, m_ref, d_ref, hist_row_ref):
    """First decoder step: plain masked softmax; initialises the carried running state."""
    del t_ref, hist_hbm_ref
    h_enc = h_enc_ref[...]
    mask = mask_ref[...] != 0
    e = _scores(mask, h_dec_ref[...], h_enc, w_ref[...])                 # (TB, S_pad) f32

    # NOTE: a fully-masked row yields NaN here, exactly like the PyTorch reference.
    row_max = jnp.max(e, axis=1, keepdims=True)
    p = jnp.exp(e - row_max)
    # pl.reciprocal(..., approx=True) is a further micro-win once tolerance allows.
    at = p * pl.reciprocal(jnp.sum(p, axis=1, keepdims=True))

    ctx_ref[...] = _context(at, h_enc, ctx_ref.dtype)
    at_ref[...] = at
    # Carried state: per-column running max (0 where masked) and sum_j exp(hist_j - m).
    m_ref[...] = jnp.where(mask, e, 0.0)
    d_ref[...] = jnp.where(mask, 1.0, 0.0).astype(jnp.float32)           # exp(e - e) == 1
    hist_row_ref[0] = e                                                  # new history row only


def attention_step_kernel(t_ref, mask_ref, h_dec_ref, h_enc_ref, w_ref,
                          m_in_ref, d_in_ref, hist_hbm_ref,
                          ctx_ref, at_ref, m_ref, d_ref, hist_row_ref):
    """Later decoder steps: running renormalisation against the carried (m, d) state.

    Reference math:
        e_max = where(mask, max(e, amax(prev, time)), 0)
        denom = sum_j exp(prev_j - e_max) + 0.001
        at    = (exp(e - e_max) / denom) / (sum_s ... + 0.001)
    with sum_j exp(prev_j - e_max) == exp(m - e_max) * d up to exp-rescaling rounding.
    """
    del t_ref, hist_hbm_ref
    h_enc = h_enc_ref[...]
    mask = mask_ref[...] != 0
    e = _scores(mask, h_dec_ref[...], h_enc, w_ref[...])                 # (TB, S_pad) f32

    m_prev = m_in_ref[...]
    d_prev = d_in_ref[...]
    e_max = jnp.where(mask, jnp.maximum(e, m_prev), 0.0)                 # == reference e_maxima
    scale = jnp.exp(m_prev - e_max)                                      # <= 1; masked cols: 1
    p_new = jnp.exp(e - e_max)                                           # masked cols: 0
    denom = scale * d_prev + 0.001                                       # epsilon at use time
    e_temp = p_new * pl.reciprocal(denom)
    at = e_temp * pl.reciprocal(jnp.sum(e_temp, axis=1, keepdims=True) + 0.001)

    ctx_ref[...] = _context(at, h_enc, ctx_ref.dtype)
    at_ref[...] = at
    m_ref[...] = e_max                                                   # new per-column max
    d_ref[...] = scale * d_prev + p_new                                  # rescaled running sum
    hist_row_ref[0] = e                                                  # new history row only


# --------------------------------------------------------------------------- wrapper

def lstm_encoder_attention(h_dec, h_enc, enc_mask, state, w, *, max_steps=None):
    """Pallas equivalent of LSTMEncoderAttention.forward with a carried running state.

    Pass state=None for the first decoder step (prev_e_enc is None in the reference) and
    give max_steps = history capacity; thereafter feed the returned state back in.
    Returns (context_enc (B, 2D), at_weights (B, S), new_state).
    For a real decode loop, cast h_enc to bf16 and pad (S -> multiple of 128,
    B -> multiple of 8) ONCE outside the loop to avoid per-step copies here.
    """
    B, S, D2 = h_enc.shape
    D = h_dec.shape[-1]
    S_pad = _round_up(S, LANE)
    B_pad = _round_up(B, 8)
    itemsize = jnp.dtype(h_enc.dtype).itemsize

    # ---- pad (no-ops if the caller already padded) ---------------------------------
    mask = enc_mask.astype(jnp.int32)
    if S_pad != S:
        mask = jnp.pad(mask, ((0, 0), (0, S_pad - S)))                   # pad cols masked out
        h_enc = jnp.pad(h_enc, ((0, 0), (0, S_pad - S), (0, 0)))
    if B_pad != B:
        # pad batch rows are fully *unmasked* over zero h_enc -> finite uniform softmax
        mask = jnp.pad(mask, ((0, B_pad - B), (0, 0)), constant_values=1)
        h_enc = jnp.pad(h_enc, ((0, B_pad - B), (0, 0), (0, 0)))
        h_dec = jnp.pad(h_dec, ((0, B_pad - B), (0, 0)))

    # ---- VMEM-aware batch tile -------------------------------------------------------
    io_row = (S_pad * D2 * itemsize          # h_enc block (dominant)
              + D * itemsize                 # h_dec
              + S_pad * 4                    # mask
              + 2 * S_pad * 4                # m/d in
              + D2 * itemsize                # ctx out
              + S_pad * 4                    # at out
              + 2 * S_pad * 4                # m/d out
              + S_pad * 4)                   # new history row
    tmp_row = 8 * S_pad * 4 + 2 * D2 * 4     # e / p / e_temp / at / scale ... f32 temporaries
    fixed = 2 * D * D2 * itemsize            # resident (double-buffered) W block
    budget, vmem_limit = _vmem_budget_and_limit()
    TB = _pick_batch_tile(B_pad, io_row, tmp_row, fixed, budget)
    grid = (B_pad // TB,)

    # ---- assemble call ---------------------------------------------------------------
    if state is None:
        if max_steps is None:
            raise ValueError("max_steps (history capacity) is required for the first step")
        t_max = max(int(max_steps), 1)
        hist = jnp.zeros((t_max, B_pad, S_pad), jnp.float32)             # preallocated once
        t_cur = jnp.asarray(0, jnp.int32)
        kernel = attention_first_kernel
        inputs = (jnp.reshape(t_cur, (1,)), mask, h_dec, h_enc, w, hist)
        state_in_specs = []
        # indices include the scalar-prefetch operand: [t, mask, h_dec, h_enc, w, hist]
        aliases = {5: 4}
    else:
        hist, m_prev, d_prev, t_prev = state
        t_max = hist.shape[0]
        t_cur = jnp.asarray(t_prev, jnp.int32)
        # clamp so an over-capacity caller overwrites the last row instead of faulting
        t_idx = jnp.minimum(t_cur, t_max - 1)
        kernel = attention_step_kernel
        inputs = (jnp.reshape(t_idx, (1,)), mask, h_dec, h_enc, w, m_prev, d_prev, hist)
        state_in_specs = [
            pl.BlockSpec((TB, S_pad), lambda b, t: (b, 0)),              # m_in
            pl.BlockSpec((TB, S_pad), lambda b, t: (b, 0)),              # d_in
        ]
        # [t, mask, h_dec, h_enc, w, m, d, hist] -> [ctx, at, m, d, hist]
        aliases = {5: 2, 6: 3, 7: 4}

    in_specs = [
        pl.BlockSpec((TB, S_pad), lambda b, t: (b, 0)),                  # mask
        pl.BlockSpec((TB, D), lambda b, t: (b, 0)),                      # h_dec
        pl.BlockSpec((TB, S_pad, D2), lambda b, t: (b, 0, 0)),           # h_enc
        pl.BlockSpec((D, D2), lambda b, t: (0, 0)),                      # W: VMEM-resident
        *state_in_specs,
        pl.BlockSpec(memory_space=pl.ANY),                               # hist (aliased, untouched)
    ]
    out_shape = (
        jax.ShapeDtypeStruct((B_pad, D2), h_enc.dtype),                  # context
        jax.ShapeDtypeStruct((B_pad, S_pad), jnp.float32),               # at (padded)
        jax.ShapeDtypeStruct((B_pad, S_pad), jnp.float32),               # m
        jax.ShapeDtypeStruct((B_pad, S_pad), jnp.float32),               # d
        jax.ShapeDtypeStruct((t_max, B_pad, S_pad), jnp.float32),        # history (aliased)
    )
    out_specs = (
        pl.BlockSpec((TB, D2), lambda b, t: (b, 0)),                     # ctx (<128 lanes OK: tiny)
        pl.BlockSpec((TB, S_pad), lambda b, t: (b, 0)),
        pl.BlockSpec((TB, S_pad), lambda b, t: (b, 0)),
        pl.BlockSpec((TB, S_pad), lambda b, t: (b, 0)),
        pl.BlockSpec((1, TB, S_pad), lambda b, t: (t[0], b, 0)),         # time-major new row only
    )

    ctx, at, m_new, d_new, hist_new = pl.pallas_call(
        kernel,
        out_shape=out_shape,
        grid_spec=pltpu.PrefetchScalarGridSpec(
            num_scalar_prefetch=1,
            grid=grid,
            in_specs=in_specs,
            out_specs=out_specs,
        ),
        input_output_aliases=aliases,
        compiler_params=pltpu.CompilerParams(
            dimension_semantics=("parallel",),
            vmem_limit_bytes=int(vmem_limit),
        ),
    )(*inputs)

    new_state = AttentionState(hist=hist_new, m=m_new, d=d_new, t=t_cur + 1)
    return ctx[:B], at[:B, :S], new_state


# --------------------------------------------------------------------------- reference

def ref_forward(h_dec, h_enc, enc_mask, prev_e_enc, w):
    """Pure-JAX reference mirroring the PyTorch forward exactly (unpadded)."""
    u = h_dec @ w
    e = jnp.einsum('bk,bsk->bs', u, h_enc)
    e = jnp.where(enc_mask, e, -jnp.inf)
    if prev_e_enc is None:
        at = jax.nn.softmax(e, axis=1)
        new_prev = e[:, None, :]
    else:
        e_max = jnp.maximum(e, jnp.max(prev_e_enc, axis=1))
        e_max = jnp.where(enc_mask, e_max, 0.0)
        e_temp = jnp.exp(e - e_max) / (
            jnp.sum(jnp.exp(prev_e_enc - e_max[:, None, :]), axis=1) + 0.001)
        at = e_temp / (jnp.sum(e_temp, axis=1, keepdims=True) + 0.001)
        new_prev = jnp.concatenate([prev_e_enc, e[:, None, :]], axis=1)
    ctx = jnp.einsum('bs,bsk->bk', at, h_enc)
    return ctx, at, new_prev


if __name__ == "__main__":
    B, S, D = 2, 8, 32        # batch, encoder seq len, config.hidden_dim (h_enc has 2*D features)
    T_MAX = 4                 # history capacity (max decoder steps)

    key = jax.random.PRNGKey(0)
    k1, k2, k3, k4, k5 = jax.random.split(key, 5)
    h_enc = jax.random.normal(k2, (B, S, 2 * D), jnp.float32)
    # nn.Bilinear(D, 2D, 1, bias=False).weight has shape (1, D, 2D); we use the squeezed (D, 2D).
    w = jax.random.normal(k3, (D, 2 * D), jnp.float32) * (1.0 / jnp.sqrt(D))
    enc_mask = jnp.array([[True] * S,
                          [True] * (S - 3) + [False] * 3])
    h_decs = [jax.random.normal(k, (B, D), jnp.float32) for k in (k1, k4, k5)]

    # ---- f32 run: three decoder steps with the carried / aliased state -----------------
    state = None
    outs = []
    for h_dec in h_decs:
        ctx, at, state = lstm_encoder_attention(h_dec, h_enc, enc_mask, state, w,
                                                max_steps=T_MAX)
        outs.append((ctx, at))
    jax.block_until_ready((outs, state))

    # ---- verify against the pure-JAX reference -----------------------------------------
    prev = None
    for step, h_dec in enumerate(h_decs):
        r_ctx, r_at, prev = ref_forward(h_dec, h_enc, enc_mask, prev, w)
        ctx, at = outs[step]
        np.testing.assert_allclose(np.asarray(ctx), np.asarray(r_ctx), rtol=2e-5, atol=2e-5)
        np.testing.assert_allclose(np.asarray(at), np.asarray(r_at), rtol=2e-5, atol=2e-5)
    # history lives time-major / padded in the state; compare the valid slab only
    hist_np = np.asarray(state.hist)[:len(h_decs), :B, :S].transpose(1, 0, 2)
    np.testing.assert_allclose(hist_np, np.asarray(prev), rtol=2e-5, atol=2e-5)

    # ---- bf16 smoke run (halves the dominant h_enc HBM stream; cast once outside loop) --
    h_enc_b = h_enc.astype(jnp.bfloat16)
    w_b = w.astype(jnp.bfloat16)
    state_b = None
    for h_dec in h_decs[:2]:
        ctx_b, at_b, state_b = lstm_encoder_attention(h_dec.astype(jnp.bfloat16), h_enc_b,
                                                      enc_mask, state_b, w_b, max_steps=T_MAX)
    jax.block_until_ready((ctx_b, at_b, state_b))
    assert np.isfinite(np.asarray(jnp.asarray(ctx_b, jnp.float32))).all()
    assert np.isfinite(np.asarray(at_b)).all()

    print("KERNEL_OK")
</pallas_src>

<mosaic_0001>
module attributes {stable_mosaic.version = 11 : i64} {
  func.func @attention_first_kernel(%arg0: i32, %arg1: memref<1xi32, #tpu.memory_space<smem>>, %arg2: memref<8x128xi32, #tpu.memory_space<vmem>>, %arg3: memref<8x32xf32, #tpu.memory_space<vmem>>, %arg4: memref<8x128x64xf32, #tpu.memory_space<vmem>>, %arg5: memref<32x64xf32, #tpu.memory_space<vmem>>, %arg6: memref<4x8x128xf32, #tpu.memory_space<any>>, %arg7: memref<8x64xf32, #tpu.memory_space<vmem>>, %arg8: memref<8x128xf32, #tpu.memory_space<vmem>>, %arg9: memref<8x128xf32, #tpu.memory_space<vmem>>, %arg10: memref<8x128xf32, #tpu.memory_space<vmem>>, %arg11: memref<1x8x128xf32, #tpu.memory_space<vmem>>) attributes {dimension_semantics = [#tpu.dimension_semantics<parallel>], iteration_bounds = array<i64: 1>, scalar_prefetch = 1 : i64, scratch_operands = 0 : i64, tpu.core_type = #tpu.core_type<tc>, window_params = [{transform_indices = @transform_0, window_bounds = array<i64: 8, 128>}, {transform_indices = @transform_1, window_bounds = array<i64: 8, 32>}, {transform_indices = @transform_2, window_bounds = array<i64: 8, 128, 64>}, {pipeline_mode = #tpu.pipeline_mode<synchronous>, transform_indices = @transform_3, window_bounds = array<i64: 32, 64>}, {}, {transform_indices = @transform_5, window_bounds = array<i64: 8, 64>}, {transform_indices = @transform_6, window_bounds = array<i64: 8, 128>}, {transform_indices = @transform_7, window_bounds = array<i64: 8, 128>}, {transform_indices = @transform_8, window_bounds = array<i64: 8, 128>}, {transform_indices = @transform_9, window_bounds = array<i64: 1, 8, 128>}]} {
    %c0 = arith.constant 0 : index
    %c0_0 = arith.constant 0 : index
    %c0_1 = arith.constant 0 : index
    %0 = vector.load %arg4[%c0, %c0_0, %c0_1] : memref<8x128x64xf32, #tpu.memory_space<vmem>>, vector<8x128x64xf32>
    %c0_2 = arith.constant 0 : index
    %c0_3 = arith.constant 0 : index
    %1 = vector.load %arg2[%c0_2, %c0_3] : memref<8x128xi32, #tpu.memory_space<vmem>>, vector<8x128xi32>
    %c0_i32 = arith.constant 0 : i32
    %2 = vector.broadcast %c0_i32 : i32 to vector<8x128xi32>
    %3 = arith.cmpi ne, %1, %2 : vector<8x128xi32>
    %c0_4 = arith.constant 0 : index
    %c0_5 = arith.constant 0 : index
    %4 = vector.load %arg3[%c0_4, %c0_5] : memref<8x32xf32, #tpu.memory_space<vmem>>, vector<8x32xf32>
    %c0_6 = arith.constant 0 : index
    %c0_7 = arith.constant 0 : index
    %5 = vector.load %arg5[%c0_6, %c0_7] : memref<32x64xf32, #tpu.memory_space<vmem>>, vector<32x64xf32>
    %cst = arith.constant dense<0.000000e+00> : vector<8x64xf32>
    %6 = tpu.matmul %4, %5, %cst {dimension_numbers = #tpu.dot_dimension_numbers<[1], [0], [0], [1], [0, 0, 1, 1], [], []>} : vector<8x32xf32>, vector<32x64xf32>, vector<8x64xf32> -> vector<8x64xf32>
    %7 = vector.shape_cast %6 : vector<8x64xf32> to vector<8x1x64xf32>
    "tpu.trace_start"() <{level = 10 : i32, message = "bqk,bsk->bqs"}> : () -> ()
    %cst_8 = arith.constant dense<0.000000e+00> : vector<8x1x128xf32>
    %8 = tpu.matmul %7, %0, %cst_8 {dimension_numbers = #tpu.dot_dimension_numbers<[2], [2], [1], [1], [0, 0, 0, 1, 1, 1], [0], [0]>} : vector<8x1x64xf32>, vector<8x128x64xf32>, vector<8x1x128xf32> -> vector<8x1x128xf32>
    "tpu.trace_stop"() : () -> ()
    %9 = vector.shape_cast %8 : vector<8x1x128xf32> to vector<8x128xf32>
    %cst_9 = arith.constant 0xFF800000 : f32
    %10 = vector.broadcast %cst_9 : f32 to vector<8x128xf32>
    %11 = arith.select %3, %9, %10 : vector<8x128xi1>, vector<8x128xf32>
    %cst_10 = arith.constant dense<0xFF800000> : vector<8xf32>
    %12 = vector.multi_reduction <maximumf>, %11, %cst_10 [1] : vector<8x128xf32> to vector<8xf32>
    %13 = vector.shape_cast %12 : vector<8xf32> to vector<8x1xf32>
    %14 = vector.broadcast %13 : vector<8x1xf32> to vector<8x128xf32>
    %15 = arith.subf %11, %14 : vector<8x128xf32>
    %16 = math.exp %15 : vector<8x128xf32>
    %cst_11 = arith.constant dense<0.000000e+00> : vector<8xf32>
    %17 = vector.multi_reduction <add>, %16, %cst_11 [1] : vector<8x128xf32> to vector<8xf32>
    %18 = vector.shape_cast %17 : vector<8xf32> to vector<8x1xf32>
    %19 = tpu.reciprocal %18 : vector<8x1xf32> -> vector<8x1xf32>
    %20 = vector.broadcast %19 : vector<8x1xf32> to vector<8x128xf32>
    %21 = arith.mulf %16, %20 : vector<8x128xf32>
    %22 = vector.shape_cast %21 : vector<8x128xf32> to vector<8x1x128xf32>
    "tpu.trace_start"() <{level = 10 : i32, message = "bqs,bsk->bqk"}> : () -> ()
    %cst_12 = arith.constant dense<0.000000e+00> : vector<8x1x64xf32>
    %23 = tpu.matmul %22, %0, %cst_12 {dimension_numbers = #tpu.dot_dimension_numbers<[2], [1], [1], [2], [0, 0, 0, 1, 1, 2], [0], [0]>} : vector<8x1x128xf32>, vector<8x128x64xf32>, vector<8x1x64xf32> -> vector<8x1x64xf32>
    "tpu.trace_stop"() : () -> ()
    %24 = vector.shape_cast %23 : vector<8x1x64xf32> to vector<8x64xf32>
    %c0_13 = arith.constant 0 : index
    %c0_14 = arith.constant 0 : index
    %25 = vector.load %arg7[%c0_13, %c0_14] : memref<8x64xf32, #tpu.memory_space<vmem>>, vector<8x64xf32>
    tpu.vector_store %arg7[%c0_13, %c0_14], %24 {strides = array<i32>} : memref<8x64xf32, #tpu.memory_space<vmem>>, vector<8x64xf32>,
    %c0_15 = arith.constant 0 : index
    %c0_16 = arith.constant 0 : index
    %26 = vector.load %arg8[%c0_15, %c0_16] : memref<8x128xf32, #tpu.memory_space<vmem>>, vector<8x128xf32>
    tpu.vector_store %arg8[%c0_15, %c0_16], %21 {strides = array<i32>} : memref<8x128xf32, #tpu.memory_space<vmem>>, vector<8x128xf32>,
    %cst_17 = arith.constant 0.000000e+00 : f32
    %27 = vector.broadcast %cst_17 : f32 to vector<8x128xf32>
    %28 = arith.select %3, %11, %27 : vector<8x128xi1>, vector<8x128xf32>
    %c0_18 = arith.constant 0 : index
    %c0_19 = arith.constant 0 : index
    %29 = vector.load %arg9[%c0_18, %c0_19] : memref<8x128xf32, #tpu.memory_space<vmem>>, vector<8x128xf32>
    tpu.vector_store %arg9[%c0_18, %c0_19], %28 {strides = array<i32>} : memref<8x128xf32, #tpu.memory_space<vmem>>, vector<8x128xf32>,
    %cst_20 = arith.constant 1.000000e+00 : f32
    %cst_21 = arith.constant 0.000000e+00 : f32
    %30 = vector.broadcast %cst_20 : f32 to vector<8x128xf32>
    %31 = vector.broadcast %cst_21 : f32 to vector<8x128xf32>
    %32 = arith.select %3, %30, %31 : vector<8x128xi1>, vector<8x128xf32>
    %c0_22 = arith.constant 0 : index
    %c0_23 = arith.constant 0 : index
    %33 = vector.load %arg10[%c0_22, %c0_23] : memref<8x128xf32, #tpu.memory_space<vmem>>, vector<8x128xf32>
    tpu.vector_store %arg10[%c0_22, %c0_23], %32 {strides = array<i32>} : memref<8x128xf32, #tpu.memory_space<vmem>>, vector<8x128xf32>,
    %c0_24 = arith.constant 0 : index
    %c0_25 = arith.constant 0 : index
    %c0_26 = arith.constant 0 : index
    %34 = vector.load %arg11[%c0_24, %c0_25, %c0_26] : memref<1x8x128xf32, #tpu.memory_space<vmem>>, vector<1x8x128xf32>
    %35 = vector.shape_cast %34 : vector<1x8x128xf32> to vector<8x128xf32>
    %36 = vector.shape_cast %11 : vector<8x128xf32> to vector<1x8x128xf32>
    tpu.vector_store %arg11[%c0_24, %c0_25, %c0_26], %36 {strides = array<i32>} : memref<1x8x128xf32, #tpu.memory_space<vmem>>, vector<1x8x128xf32>,
    return
  }
  func.func @transform_0(%arg0: i32, %arg1: memref<1xi32, #tpu.memory_space<smem>>) -> (i32, i32) {
    %c0_i32 = arith.constant 0 : i32
    %c0_i32_0 = arith.constant 0 : i32
    return %arg0, %c0_i32 : i32, i32
  }
  func.func @transform_1(%arg0: i32, %arg1: memref<1xi32, #tpu.memory_space<smem>>) -> (i32, i32) {
    %c0_i32 = arith.constant 0 : i32
    %c0_i32_0 = arith.constant 0 : i32
    return %arg0, %c0_i32 : i32, i32
  }
  func.func @transform_2(%arg0: i32, %arg1: memref<1xi32, #tpu.memory_space<smem>>) -> (i32, i32, i32) {
    %c0_i32 = arith.constant 0 : i32
    %c0_i32_0 = arith.constant 0 : i32
    %c0_i32_1 = arith.constant 0 : i32
    return %arg0, %c0_i32, %c0_i32_0 : i32, i32, i32
  }
  func.func @transform_3(%arg0: i32, %arg1: memref<1xi32, #tpu.memory_space<smem>>) -> (i32, i32) {
    %c0_i32 = arith.constant 0 : i32
    %c0_i32_0 = arith.constant 0 : i32
    %c0_i32_1 = arith.constant 0 : i32
    return %c0_i32, %c0_i32_0 : i32, i32
  }
  func.func @transform_5(%arg0: i32, %arg1: memref<1xi32, #tpu.memory_space<smem>>) -> (i32, i32) {
    %c0_i32 = arith.constant 0 : i32
    %c0_i32_0 = arith.constant 0 : i32
    return %arg0, %c0_i32 : i32, i32
  }
  func.func @transform_6(%arg0: i32, %arg1: memref<1xi32, #tpu.memory_space<smem>>) -> (i32, i32) {
    %c0_i32 = arith.constant 0 : i32
    %c0_i32_0 = arith.constant 0 : i32
    return %arg0, %c0_i32 : i32, i32
  }
  func.func @transform_7(%arg0: i32, %arg1: memref<1xi32, #tpu.memory_space<smem>>) -> (i32, i32) {
    %c0_i32 = arith.constant 0 : i32
    %c0_i32_0 = arith.constant 0 : i32
    return %arg0, %c0_i32 : i32, i32
  }
  func.func @transform_8(%arg0: i32, %arg1: memref<1xi32, #tpu.memory_space<smem>>) -> (i32, i32) {
    %c0_i32 = arith.constant 0 : i32
    %c0_i32_0 = arith.constant 0 : i32
    return %arg0, %c0_i32 : i32, i32
  }
  func.func @transform_9(%arg0: i32, %arg1: memref<1xi32, #tpu.memory_space<smem>>) -> (i32, i32, i32) {
    %c0 = arith.constant 0 : index
    %0 = memref.load %arg1[%c0] : memref<1xi32, #tpu.memory_space<smem>>
    %c0_i32 = arith.constant 0 : i32
    %c0_i32_0 = arith.constant 0 : i32
    return %0, %arg0, %c0_i32 : i32, i32, i32
  }
}

</mosaic_0001>

<llo_original>
// kernel: tpu_custom_call.1
$region0: #{tpu_custom_call.1}
  #allocation0 [shape = 'u32[]', space=smem, size = 0x4, offset = 0x4, fixed_abs, tag = 'smem constant byte address 0x4 - core index']
  #allocation1 [shape = 'u32[144,128]{1,0:T(1,128)}', space=vmem, size = 0x12000, scoped, tag = 'internal scratch']
  #allocation2 [shape = 's32[1]{0}', space=sflag, size = 0x4, scoped, tag = 'scoped memory for tpu_custom_call.1']
  #allocation3 [shape = 's32[1]{0:T(128)S(6)}', space=smem, size = 0x200, scoped, tag = 'prefetched SMEM operand 0']
  %s0 = inlined_call_operand.<no memory space> [shape: s32[1], index: 0, kind: input, shape index: {}]
  %s1 = inlined_call_operand.vmem [shape: s32[8,128], index: 1, kind: input, shape index: {}]
  %s2 = inlined_call_operand.vmem [shape: f32[8,32], index: 2, kind: input, shape index: {}]
  %s3 = inlined_call_operand.vmem [shape: f32[8,128,64], index: 3, kind: input, shape index: {}]
  %s4 = inlined_call_operand.vmem [shape: f32[32,64], index: 4, kind: input, shape index: {}]
  %s5 = inlined_call_operand.hbm [shape: f32[4,8,128], index: 5, kind: input, shape index: {}, may-alias: {5,10}]
  %s6 = inlined_call_operand.hbm [shape: f32[8,64], index: 6, kind: output, shape index: {0}]
  %s7 = inlined_call_operand.hbm [shape: f32[8,128], index: 7, kind: output, shape index: {1}]
  %s8 = inlined_call_operand.hbm [shape: f32[8,128], index: 8, kind: output, shape index: {2}]
  %s9 = inlined_call_operand.hbm [shape: f32[8,128], index: 9, kind: output, shape index: {3}]
  %s10 = inlined_call_operand.hbm [shape: f32[4,8,128], index: 10, kind: output, shape index: {4}, may-alias: {5,10}]
  %11 = xla_tuple %s6, %s7, %s8, %s9, %s10
  %s12 = sld [smem:[#allocation0]]
  $region58: #{tpu_custom_call.1} parent=0
    _
  %s14 = ssub.s32 1, %s12
  %s15 = scalar_select 0, %s14, %s12
  %16 = sst [smem:[#allocation3]] %s0
  $region1: #{tpu_custom_call.1} parent=0
    #allocation4 [shape = 'u8[4096]{0}', space=vmem, size = 0x1000, scoped, tag = 'output window, operand 0, single buffered']
    #allocation5 [shape = 's32[1]{0}', space=sflag, size = 0x4, scoped, tag = 'scoped memory for tpu_custom_call.1']
    #allocation6 [shape = 'u8[4096]{0}', space=vmem, size = 0x1000, scoped, tag = 'output window, operand 1, single buffered']
    #allocation7 [shape = 's32[1]{0}', space=sflag, size = 0x4, scoped, tag = 'scoped memory for tpu_custom_call.1']
    #allocation8 [shape = 'u8[4096]{0}', space=vmem, size = 0x1000, scoped, tag = 'output window, operand 2, single buffered']
    #allocation9 [shape = 'u8[4096]{0}', space=vmem, size = 0x1000, scoped, tag = 'output window, operand 3, single buffered']
    #allocation10 [shape = 's32[1]{0}', space=sflag, size = 0x4, scoped, tag = 'scoped memory for tpu_custom_call.1']
    #allocation11 [shape = 'u8[4096]{0}', space=vmem, size = 0x1000, scoped, tag = 'output window, operand 4, single buffered']
    %17 = vsyncpa [#allocation5], 0
    %18 = vsyncpa [#allocation7], 0
    %19 = vsyncpa [#allocation10], 0
    // Predicated region
    $region2: #{tpu_custom_call.1} parent=1 // pred_check
      _
    $region3: #{tpu_custom_call.1} parent=1 // pred_check_branch
      %21 = sbr.rel (0) target = $region5
    $region4: #{tpu_custom_call.1} parent=1 // pred_region
      _
    $region5: #{tpu_custom_call.1} parent=1 // pred_fallthru
      _
    // Predicated region
    $region6: #{tpu_custom_call.1} parent=1 // pred_check
      _
    $region7: #{tpu_custom_call.1} parent=1 // pred_check_branch
      %23 = sbr.rel (0) target = $region9
    $region8: #{tpu_custom_call.1} parent=1 // pred_region
      _
    $region9: #{tpu_custom_call.1} parent=1 // pred_fallthru
      _
    // Predicated region
    $region10: #{tpu_custom_call.1} parent=1 // pred_check
      _
    $region11: #{tpu_custom_call.1} parent=1 // pred_check_branch
      %25 = sbr.rel (0) target = $region13
    $region12: #{tpu_custom_call.1} parent=1 // pred_region
      _
    $region13: #{tpu_custom_call.1} parent=1 // pred_fallthru
      _
    // Predicated region
    $region14: #{tpu_custom_call.1} parent=1 // pred_check
      _
    $region15: #{tpu_custom_call.1} parent=1 // pred_check_branch
      %27 = sbr.rel (0) target = $region17
    $region16: #{tpu_custom_call.1} parent=1 // pred_region
      _
    $region17: #{tpu_custom_call.1} parent=1 // pred_fallthru
      _
    %s28 = sld [smem:[#allocation3]]
    %v29 = vld [vmem:[%s3] sm:$0xff]
    %v30 = vld [vmem:[%s3 + $0x8] sm:$0xff]
    %v31 = vld [vmem:[%s3 + $0x10] sm:$0xff]
    %v32 = vld [vmem:[%s3 + $0x18] sm:$0xff]
    %v33 = vld [vmem:[%s3 + $0x20] sm:$0xff]
    %v34 = vld [vmem:[%s3 + $0x28] sm:$0xff]
    %v35 = vld [vmem:[%s3 + $0x30] sm:$0xff]
    %v36 = vld [vmem:[%s3 + $0x38] sm:$0xff]
    %v37 = vld [vmem:[%s3 + $0x40] sm:$0xff]
    %v38 = vld [vmem:[%s3 + $0x48] sm:$0xff]
    %v39 = vld [vmem:[%s3 + $0x50] sm:$0xff]
    %v40 = vld [vmem:[%s3 + $0x58] sm:$0xff]
    %v41 = vld [vmem:[%s3 + $0x60] sm:$0xff]
    %v42 = vld [vmem:[%s3 + $0x68] sm:$0xff]
    %v43 = vld [vmem:[%s3 + $0x70] sm:$0xff]
    %v44 = vld [vmem:[%s3 + $0x78] sm:$0xff]
    %v45 = vld [vmem:[%s3 + $0x80] sm:$0xff]
    %v46 = vld [vmem:[%s3 + $0x88] sm:$0xff]
    %v47 = vld [vmem:[%s3 + $0x90] sm:$0xff]
    %v48 = vld [vmem:[%s3 + $0x98] sm:$0xff]
    %v49 = vld [vmem:[%s3 + $0xa0] sm:$0xff]
    %v50 = vld [vmem:[%s3 + $0xa8] sm:$0xff]
    %v51 = vld [vmem:[%s3 + $0xb0] sm:$0xff]
    %v52 = vld [vmem:[%s3 + $0xb8] sm:$0xff]
    %v53 = vld [vmem:[%s3 + $0xc0] sm:$0xff]
    %v54 = vld [vmem:[%s3 + $0xc8] sm:$0xff]
    %v55 = vld [vmem:[%s3 + $0xd0] sm:$0xff]
    %v56 = vld [vmem:[%s3 + $0xd8] sm:$0xff]
    %v57 = vld [vmem:[%s3 + $0xe0] sm:$0xff]
    %v58 = vld [vmem:[%s3 + $0xe8] sm:$0xff]
    %v59 = vld [vmem:[%s3 + $0xf0] sm:$0xff]
    %v60 = vld [vmem:[%s3 + $0xf8] sm:$0xff]
    %v61 = vld [vmem:[%s3 + $0x100] sm:$0xff]
    %v62 = vld [vmem:[%s3 + $0x108] sm:$0xff]
    %v63 = vld [vmem:[%s3 + $0x110] sm:$0xff]
    %v64 = vld [vmem:[%s3 + $0x118] sm:$0xff]
    %v65 = vld [vmem:[%s3 + $0x120] sm:$0xff]
    %v66 = vld [vmem:[%s3 + $0x128] sm:$0xff]
    %v67 = vld [vmem:[%s3 + $0x130] sm:$0xff]
    %v68 = vld [vmem:[%s3 + $0x138] sm:$0xff]
    %v69 = vld [vmem:[%s3 + $0x140] sm:$0xff]
    %v70 = vld [vmem:[%s3 + $0x148] sm:$0xff]
    %v71 = vld [vmem:[%s3 + $0x150] sm:$0xff]
    %v72 = vld [vmem:[%s3 + $0x158] sm:$0xff]
    %v73 = vld [vmem:[%s3 + $0x160] sm:$0xff]
    %v74 = vld [vmem:[%s3 + $0x168] sm:$0xff]
    %v75 = vld [vmem:[%s3 + $0x170] sm:$0xff]
    %v76 = vld [vmem:[%s3 + $0x178] sm:$0xff]
    %v77 = vld [vmem:[%s3 + $0x180] sm:$0xff]
    %v78 = vld [vmem:[%s3 + $0x188] sm:$0xff]
    %v79 = vld [vmem:[%s3 + $0x190] sm:$0xff]
    %v80 = vld [vmem:[%s3 + $0x198] sm:$0xff]
    %v81 = vld [vmem:[%s3 + $0x1a0] sm:$0xff]
    %v82 = vld [vmem:[%s3 + $0x1a8] sm:$0xff]
    %v83 = vld [vmem:[%s3 + $0x1b0] sm:$0xff]
    %v84 = vld [vmem:[%s3 + $0x1b8] sm:$0xff]
    %v85 = vld [vmem:[%s3 + $0x1c0] sm:$0xff]
    %v86 = vld [vmem:[%s3 + $0x1c8] sm:$0xff]
    %v87 = vld [vmem:[%s3 + $0x1d0] sm:$0xff]
    %v88 = vld [vmem:[%s3 + $0x1d8] sm:$0xff]
    %v89 = vld [vmem:[%s3 + $0x1e0] sm:$0xff]
    %v90 = vld [vmem:[%s3 + $0x1e8] sm:$0xff]
    %v91 = vld [vmem:[%s3 + $0x1f0] sm:$0xff]
    %v92 = vld [vmem:[%s3 + $0x1f8] sm:$0xff]
    %v93 = vld [vmem:[%s3 + $0x200] sm:$0xff]
    %v94 = vld [vmem:[%s3 + $0x208] sm:$0xff]
    %v95 = vld [vmem:[%s3 + $0x210] sm:$0xff]
    %v96 = vld [vmem:[%s3 + $0x218] sm:$0xff]
    %v97 = vld [vmem:[%s3 + $0x220] sm:$0xff]
    %v98 = vld [vmem:[%s3 + $0x228] sm:$0xff]
    %v99 = vld [vmem:[%s3 + $0x230] sm:$0xff]
    %v100 = vld [vmem:[%s3 + $0x238] sm:$0xff]
    %v101 = vld [vmem:[%s3 + $0x240] sm:$0xff]
    %v102 = vld [vmem:[%s3 + $0x248] sm:$0xff]
    %v103 = vld [vmem:[%s3 + $0x250] sm:$0xff]
    %v104 = vld [vmem:[%s3 + $0x258] sm:$0xff]
    %v105 = vld [vmem:[%s3 + $0x260] sm:$0xff]
    %v106 = vld [vmem:[%s3 + $0x268] sm:$0xff]
    %v107 = vld [vmem:[%s3 + $0x270] sm:$0xff]
    %v108 = vld [vmem:[%s3 + $0x278] sm:$0xff]
    %v109 = vld [vmem:[%s3 + $0x280] sm:$0xff]
    %v110 = vld [vmem:[%s3 + $0x288] sm:$0xff]
    %v111 = vld [vmem:[%s3 + $0x290] sm:$0xff]
    %v112 = vld [vmem:[%s3 + $0x298] sm:$0xff]
    %v113 = vld [vmem:[%s3 + $0x2a0] sm:$0xff]
    %v114 = vld [vmem:[%s3 + $0x2a8] sm:$0xff]
    %v115 = vld [vmem:[%s3 + $0x2b0] sm:$0xff]
    %v116 = vld [vmem:[%s3 + $0x2b8] sm:$0xff]
    %v117 = vld [vmem:[%s3 + $0x2c0] sm:$0xff]
    %v118 = vld [vmem:[%s3 + $0x2c8] sm:$0xff]
    %v119 = vld [vmem:[%s3 + $0x2d0] sm:$0xff]
    %v120 = vld [vmem:[%s3 + $0x2d8] sm:$0xff]
    %v121 = vld [vmem:[%s3 + $0x2e0] sm:$0xff]
    %v122 = vld [vmem:[%s3 + $0x2e8] sm:$0xff]
    %v123 = vld [vmem:[%s3 + $0x2f0] sm:$0xff]
    %v124 = vld [vmem:[%s3 + $0x2f8] sm:$0xff]
    %v125 = vld [vmem:[%s3 + $0x300] sm:$0xff]
    %v126 = vld [vmem:[%s3 + $0x308] sm:$0xff]
    %v127 = vld [vmem:[%s3 + $0x310] sm:$0xff]
    %v128 = vld [vmem:[%s3 + $0x318] sm:$0xff]
    %v129 = vld [vmem:[%s3 + $0x320] sm:$0xff]
    %v130 = vld [vmem:[%s3 + $0x328] sm:$0xff]
    %v131 = vld [vmem:[%s3 + $0x330] sm:$0xff]
    %v132 = vld [vmem:[%s3 + $0x338] sm:$0xff]
    %v133 = vld [vmem:[%s3 + $0x340] sm:$0xff]
    %v134 = vld [vmem:[%s3 + $0x348] sm:$0xff]
    %v135 = vld [vmem:[%s3 + $0x350] sm:$0xff]
    %v136 = vld [vmem:[%s3 + $0x358] sm:$0xff]
    %v137 = vld [vmem:[%s3 + $0x360] sm:$0xff]
    %v138 = vld [vmem:[%s3 + $0x368] sm:$0xff]
    %v139 = vld [vmem:[%s3 + $0x370] sm:$0xff]
    %v140 = vld [vmem:[%s3 + $0x378] sm:$0xff]
    %v141 = vld [vmem:[%s3 + $0x380] sm:$0xff]
    %v142 = vld [vmem:[%s3 + $0x388] sm:$0xff]
    %v143 = vld [vmem:[%s3 + $0x390] sm:$0xff]
    %v144 = vld [vmem:[%s3 + $0x398] sm:$0xff]
    %v145 = vld [vmem:[%s3 + $0x3a0] sm:$0xff]
    %v146 = vld [vmem:[%s3 + $0x3a8] sm:$0xff]
    %v147 = vld [vmem:[%s3 + $0x3b0] sm:$0xff]
    %v148 = vld [vmem:[%s3 + $0x3b8] sm:$0xff]
    %v149 = vld [vmem:[%s3 + $0x3c0] sm:$0xff]
    %v150 = vld [vmem:[%s3 + $0x3c8] sm:$0xff]
    %v151 = vld [vmem:[%s3 + $0x3d0] sm:$0xff]
    %v152 = vld [vmem:[%s3 + $0x3d8] sm:$0xff]
    %v153 = vld [vmem:[%s3 + $0x3e0] sm:$0xff]
    %v154 = vld [vmem:[%s3 + $0x3e8] sm:$0xff]
    %v155 = vld [vmem:[%s3 + $0x3f0] sm:$0xff]
    %v156 = vld [vmem:[%s3 + $0x3f8] sm:$0xff]
    %v157 = vld [vmem:[%s1] sm:$0xff]
    %vm158 = vcmp.ne.s32.totalorder %v157, 0
    %v159 = vld [vmem:[%s2] sm:$0xff]
    %v160 = vld [vmem:[%s4] sm:$0xff]
    %v161 = vld [vmem:[%s4 + $0x8] sm:$0xff]
    %v162 = vld [vmem:[%s4 + $0x10] sm:$0xff]
    %v163 = vld [vmem:[%s4 + $0x18] sm:$0xff]
    %vm164 = vcmask 261120
    %v166 = vsel %vm164, %v159, 0
    %168 = vmatprep.subr.mxu0 0.0
    %169 = vmatpush1.msra.mxu0 0.0
    %170 = vmatprep.subr.mxu0 0.0
    %171 = vmatpush1.msra.mxu0 0.0
    %172 = vmatprep.subr.mxu0 0.0
    %173 = vmatpush1.msra.mxu0 0.0
    %174 = vmatprep.subr.mxu0 0.0
    %175 = vmatpush1.msra.mxu0 0.0
    %176 = vmatprep.subr.mxu0 0.0
    %177 = vmatpush1.msra.mxu0 0.0
    %178 = vmatprep.subr.mxu0 0.0
    %179 = vmatpush1.msra.mxu0 0.0
    %180 = vmatprep.subr.mxu0 0.0
    %181 = vmatpush1.msra.mxu0 0.0
    %182 = vmatprep.subr.mxu0 0.0
    %183 = vmatpush1.msra.mxu0 0.0
    %184 = vmatprep.subr.mxu0 0.0
    %185 = vmatpush1.msra.mxu0 0.0
    %186 = vmatprep.subr.mxu0 0.0
    %187 = vmatpush1.msra.mxu0 0.0
    %188 = vmatprep.subr.mxu0 0.0
    %189 = vmatpush1.msra.mxu0 0.0
    %190 = vmatprep.subr.mxu0 0.0
    %191 = vmatpush1.msra.mxu0 0.0
    %192 = vmatprep.subr.mxu0 0.0
    %193 = vmatpush1.msra.mxu0 %v163
    %194 = vmatprep.subr.mxu0 0.0
    %195 = vmatpush1.msra.mxu0 %v162
    %196 = vmatprep.subr.mxu0 0.0
    %197 = vmatpush1.msra.mxu0 %v161
    %198 = vmatprep.subr.mxu0 0.0
    %199 = vmatpush1.msra.mxu0 %v160
    %200 = vmatprep.subr.mxu0 0.0
    %201 = vmatpush2.msra.mxu0 0.0
    %202 = vmatprep.subr.mxu0 0.0
    %203 = vmatpush2.msra.mxu0 0.0
    %204 = vmatprep.subr.mxu0 0.0
    %205 = vmatpush2.msra.mxu0 0.0
    %206 = vmatprep.subr.mxu0 0.0
    %207 = vmatpush2.msra.mxu0 0.0
    %208 = vmatprep.subr.mxu0 0.0
    %209 = vmatpush2.msra.mxu0 0.0
    %210 = vmatprep.subr.mxu0 0.0
    %211 = vmatpush2.msra.mxu0 0.0
    %212 = vmatprep.subr.mxu0 0.0
    %213 = vmatpush2.msra.mxu0 0.0
    %214 = vmatprep.subr.mxu0 0.0
    %215 = vmatpush2.msra.mxu0 0.0
    %216 = vmatprep.subr.mxu0 0.0
    %217 = vmatpush2.msra.mxu0 0.0
    %218 = vmatprep.subr.mxu0 0.0
    %219 = vmatpush2.msra.mxu0 0.0
    %220 = vmatprep.subr.mxu0 0.0
    %221 = vmatpush2.msra.mxu0 0.0
    %222 = vmatprep.subr.mxu0 0.0
    %223 = vmatpush2.msra.mxu0 0.0
    %224 = vmatprep.subr.mxu0 0.0
    %225 = vmatpush2.msra.mxu0 0.0
    %226 = vmatprep.subr.mxu0 0.0
    %227 = vmatpush2.msra.mxu0 0.0
    %228 = vmatprep.subr.mxu0 0.0
    %229 = vmatpush2.msra.mxu0 0.0
    %230 = vmatprep.subr.mxu0 0.0
    %231 = vmatpush2.msra.mxu0 0.0
    %232 = vmatprep.mubr.f32.mxu0 0.0
    %233 = vmatmul.mubr.f32.gmra.mxu0 %v166
    %v234 = vpop.f32.mrf.mxu0
    %v235 = vadd.f32 0.0, %v234
    %v236 = vpop.f32.mrf.mxu0
    %237 = vdwg.mxu0
    %v239 = vcombine.high %v235, %v235
    %v241 = vunpack.c.l.s4 1966171168
    %v242 = vunpack.c.0.s8 %v241
    %v243 = vlaneseq
    %v244 = vshrl.u32 %v243, 7
    %v245 = vsub.s32 %v242, %v244
    %v246 = vrot.slane %v235, %v245
    %v248 = vunpack.c.l.s4 1966171168
    %v249 = vunpack.c.0.s8 %v248
    %v250 = vlaneseq
    %v251 = vshrl.u32 %v250, 7
    %v252 = vsub.s32 %v249, %v251
    %v253 = vrot.slane %v239, %v252
    %v254 = vcombine.high %v246, %v246
    %v255 = vcombine.high %v253, %v253
    %v257 = vunpack.c.l.s4 1966171168
    %v258 = vunpack.c.0.s8 %v257
    %v259 = vlaneseq
    %v260 = vshrl.u32 %v259, 7
    %v261 = vsub.s32 %v258, %v260
    %v262 = vrot.slane %v246, %v261
    %v264 = vunpack.c.l.s4 1966171168
    %v265 = vunpack.c.0.s8 %v264
    %v266 = vlaneseq
    %v267 = vshrl.u32 %v266, 7
    %v268 = vsub.s32 %v265, %v267
    %v269 = vrot.slane %v253, %v268
    %v271 = vunpack.c.l.s4 1966171168
    %v272 = vunpack.c.0.s8 %v271
    %v273 = vlaneseq
    %v274 = vshrl.u32 %v273, 7
    %v275 = vsub.s32 %v272, %v274
    %v276 = vrot.slane %v254, %v275
    %v278 = vunpack.c.l.s4 1966171168
    %v279 = vunpack.c.0.s8 %v278
    %v280 = vlaneseq
    %v281 = vshrl.u32 %v280, 7
    %v282 = vsub.s32 %v279, %v281
    %v283 = vrot.slane %v255, %v282
    %v284 = vcombine.high %v262, %v262
    %v285 = vcombine.high %v269, %v269
    %v286 = vcombine.high %v276, %v276
    %v287 = vcombine.high %v283, %v283
    %vm288 = vcmask 523264
    %v289 = vsel %vm288, %v262, 0
    %v292 = vsel %vm288, %v29, 0
    %v295 = vsel %vm288, %v30, 0
    %v298 = vsel %vm288, %v31, 0
    %v301 = vsel %vm288, %v32, 0
    %v304 = vsel %vm288, %v33, 0
    %v307 = vsel %vm288, %v34, 0
    %v310 = vsel %vm288, %v35, 0
    %v313 = vsel %vm288, %v36, 0
    %v316 = vsel %vm288, %v37, 0
    %v319 = vsel %vm288, %v38, 0
    %v322 = vsel %vm288, %v39, 0
    %v325 = vsel %vm288, %v40, 0
    %v328 = vsel %vm288, %v41, 0
    %v331 = vsel %vm288, %v42, 0
    %v334 = vsel %vm288, %v43, 0
    %v337 = vsel %vm288, %v44, 0
    %339 = vmatprep.subr.mxu0 0.0
    %340 = vmatpush1.xpose.msra.mxu0 %v337
    %341 = vmatprep.subr.mxu0 0.0
    %342 = vmatpush1.xpose.msra.mxu0 %v334
    %343 = vmatprep.subr.mxu0 0.0
    %344 = vmatpush1.xpose.msra.mxu0 %v331
    %345 = vmatprep.subr.mxu0 0.0
    %346 = vmatpush1.xpose.msra.mxu0 %v328
    %347 = vmatprep.subr.mxu0 0.0
    %348 = vmatpush1.xpose.msra.mxu0 %v325
    %349 = vmatprep.subr.mxu0 0.0
    %350 = vmatpush1.xpose.msra.mxu0 %v322
    %351 = vmatprep.subr.mxu0 0.0
    %352 = vmatpush1.xpose.msra.mxu0 %v319
    %353 = vmatprep.subr.mxu0 0.0
    %354 = vmatpush1.xpose.msra.mxu0 %v316
    %355 = vmatprep.subr.mxu0 0.0
    %356 = vmatpush1.xpose.msra.mxu0 %v313
    %357 = vmatprep.subr.mxu0 0.0
    %358 = vmatpush1.xpose.msra.mxu0 %v310
    %359 = vmatprep.subr.mxu0 0.0
    %360 = vmatpush1.xpose.msra.mxu0 %v307
    %361 = vmatprep.subr.mxu0 0.0
    %362 = vmatpush1.xpose.msra.mxu0 %v304
    %363 = vmatprep.subr.mxu0 0.0
    %364 = vmatpush1.xpose.msra.mxu0 %v301
    %365 = vmatprep.subr.mxu0 0.0
    %366 = vmatpush1.xpose.msra.mxu0 %v298
    %367 = vmatprep.subr.mxu0 0.0
    %368 = vmatpush1.xpose.msra.mxu0 %v295
    %369 = vmatprep.subr.mxu0 0.0
    %370 = vmatpush1.xpose.msra.mxu0 %v292
    %371 = vmatprep.subr.mxu0 0.0
    %372 = vmatpush2.xpose.msra.mxu0 0.0
    %373 = vmatprep.subr.mxu0 0.0
    %374 = vmatpush2.xpose.msra.mxu0 0.0
    %375 = vmatprep.subr.mxu0 0.0
    %376 = vmatpush2.xpose.msra.mxu0 0.0
    %377 = vmatprep.subr.mxu0 0.0
    %378 = vmatpush2.xpose.msra.mxu0 0.0
    %379 = vmatprep.subr.mxu0 0.0
    %380 = vmatpush2.xpose.msra.mxu0 0.0
    %381 = vmatprep.subr.mxu0 0.0
    %382 = vmatpush2.xpose.msra.mxu0 0.0
    %383 = vmatprep.subr.mxu0 0.0
    %384 = vmatpush2.xpose.msra.mxu0 0.0
    %385 = vmatprep.subr.mxu0 0.0
    %386 = vmatpush2.xpose.msra.mxu0 0.0
    %387 = vmatprep.subr.mxu0 0.0
    %388 = vmatpush2.xpose.msra.mxu0 0.0
    %389 = vmatprep.subr.mxu0 0.0
    %390 = vmatpush2.xpose.msra.mxu0 0.0
    %391 = vmatprep.subr.mxu0 0.0
    %392 = vmatpush2.xpose.msra.mxu0 0.0
    %393 = vmatprep.subr.mxu0 0.0
    %394 = vmatpush2.xpose.msra.mxu0 0.0
    %395 = vmatprep.subr.mxu0 0.0
    %396 = vmatpush2.xpose.msra.mxu0 0.0
    %397 = vmatprep.subr.mxu0 0.0
    %398 = vmatpush2.xpose.msra.mxu0 0.0
    %399 = vmatprep.subr.mxu0 0.0
    %400 = vmatpush2.xpose.msra.mxu0 0.0
    %401 = vmatprep.subr.mxu0 0.0
    %402 = vmatpush2.xpose.msra.mxu0 0.0
    %403 = vmatprep.mubr.f32.mxu0 0.0
    %404 = vmatmul.mubr.f32.gmra.mxu0 %v289
    %v405 = vpop.f32.mrf.mxu0
    %v406 = vadd.f32 0.0, %v405
    %v407 = vpop.f32.mrf.mxu0
    %408 = vdwg.mxu0
    %v409 = vsel %vm288, %v276, 0
    %v412 = vsel %vm288, %v45, 0
    %v415 = vsel %vm288, %v46, 0
    %v418 = vsel %vm288, %v47, 0
    %v421 = vsel %vm288, %v48, 0
    %v424 = vsel %vm288, %v49, 0
    %v427 = vsel %vm288, %v50, 0
    %v430 = vsel %vm288, %v51, 0
    %v433 = vsel %vm288, %v52, 0
    %v436 = vsel %vm288, %v53, 0
    %v439 = vsel %vm288, %v54, 0
    %v442 = vsel %vm288, %v55, 0
    %v445 = vsel %vm288, %v56, 0
    %v448 = vsel %vm288, %v57, 0
    %v451 = vsel %vm288, %v58, 0
    %v454 = vsel %vm288, %v59, 0
    %v457 = vsel %vm288, %v60, 0
    %459 = vmatprep.subr.mxu0 0.0
    %460 = vmatpush1.xpose.msra.mxu0 %v457
    %461 = vmatprep.subr.mxu0 0.0
    %462 = vmatpush1.xpose.msra.mxu0 %v454
    %463 = vmatprep.subr.mxu0 0.0
    %464 = vmatpush1.xpose.msra.mxu0 %v451
    %465 = vmatprep.subr.mxu0 0.0
    %466 = vmatpush1.xpose.msra.mxu0 %v448
    %467 = vmatprep.subr.mxu0 0.0
    %468 = vmatpush1.xpose.msra.mxu0 %v445
    %469 = vmatprep.subr.mxu0 0.0
    %470 = vmatpush1.xpose.msra.mxu0 %v442
    %471 = vmatprep.subr.mxu0 0.0
    %472 = vmatpush1.xpose.msra.mxu0 %v439
    %473 = vmatprep.subr.mxu0 0.0
    %474 = vmatpush1.xpose.msra.mxu0 %v436
    %475 = vmatprep.subr.mxu0 0.0
    %476 = vmatpush1.xpose.msra.mxu0 %v433
    %477 = vmatprep.subr.mxu0 0.0
    %478 = vmatpush1.xpose.msra.mxu0 %v430
    %479 = vmatprep.subr.mxu0 0.0
    %480 = vmatpush1.xpose.msra.mxu0 %v427
    %481 = vmatprep.subr.mxu0 0.0
    %482 = vmatpush1.xpose.msra.mxu0 %v424
    %483 = vmatprep.subr.mxu0 0.0
    %484 = vmatpush1.xpose.msra.mxu0 %v421
    %485 = vmatprep.subr.mxu0 0.0
    %486 = vmatpush1.xpose.msra.mxu0 %v418
    %487 = vmatprep.subr.mxu0 0.0
    %488 = vmatpush1.xpose.msra.mxu0 %v415
    %489 = vmatprep.subr.mxu0 0.0
    %490 = vmatpush1.xpose.msra.mxu0 %v412
    %491 = vmatprep.subr.mxu0 0.0
    %492 = vmatpush2.xpose.msra.mxu0 0.0
    %493 = vmatprep.subr.mxu0 0.0
    %494 = vmatpush2.xpose.msra.mxu0 0.0
    %495 = vmatprep.subr.mxu0 0.0
    %496 = vmatpush2.xpose.msra.mxu0 0.0
    %497 = vmatprep.subr.mxu0 0.0
    %498 = vmatpush2.xpose.msra.mxu0 0.0
    %499 = vmatprep.subr.mxu0 0.0
    %500 = vmatpush2.xpose.msra.mxu0 0.0
    %501 = vmatprep.subr.mxu0 0.0
    %502 = vmatpush2.xpose.msra.mxu0 0.0
    %503 = vmatprep.subr.mxu0 0.0
    %504 = vmatpush2.xpose.msra.mxu0 0.0
    %505 = vmatprep.subr.mxu0 0.0
    %506 = vmatpush2.xpose.msra.mxu0 0.0
    %507 = vmatprep.subr.mxu0 0.0
    %508 = vmatpush2.xpose.msra.mxu0 0.0
    %509 = vmatprep.subr.mxu0 0.0
    %510 = vmatpush2.xpose.msra.mxu0 0.0
    %511 = vmatprep.subr.mxu0 0.0
    %512 = vmatpush2.xpose.msra.mxu0 0.0
    %513 = vmatprep.subr.mxu0 0.0
    %514 = vmatpush2.xpose.msra.mxu0 0.0
    %515 = vmatprep.subr.mxu0 0.0
    %516 = vmatpush2.xpose.msra.mxu0 0.0
    %517 = vmatprep.subr.mxu0 0.0
    %518 = vmatpush2.xpose.msra.mxu0 0.0
    %519 = vmatprep.subr.mxu0 0.0
    %520 = vmatpush2.xpose.msra.mxu0 0.0
    %521 = vmatprep.subr.mxu0 0.0
    %522 = vmatpush2.xpose.msra.mxu0 0.0
    %523 = vmatprep.mubr.f32.mxu0 0.0
    %524 = vmatmul.mubr.f32.gmra.mxu0 %v409
    %v525 = vpop.f32.mrf.mxu0
    %v526 = vadd.f32 0.0, %v525
    %v527 = vpop.f32.mrf.mxu0
    %528 = vdwg.mxu0
    %v529 = vsel %vm288, %v284, 0
    %v532 = vsel %vm288, %v61, 0
    %v535 = vsel %vm288, %v62, 0
    %v538 = vsel %vm288, %v63, 0
    %v541 = vsel %vm288, %v64, 0
    %v544 = vsel %vm288, %v65, 0
    %v547 = vsel %vm288, %v66, 0
    %v550 = vsel %vm288, %v67, 0
    %v553 = vsel %vm288, %v68, 0
    %v556 = vsel %vm288, %v69, 0
    %v559 = vsel %vm288, %v70, 0
    %v562 = vsel %vm288, %v71, 0
    %v565 = vsel %vm288, %v72, 0
    %v568 = vsel %vm288, %v73, 0
    %v571 = vsel %vm288, %v74, 0
    %v574 = vsel %vm288, %v75, 0
    %v577 = vsel %vm288, %v76, 0
    %579 = vmatprep.subr.mxu0 0.0
    %580 = vmatpush1.xpose.msra.mxu0 %v577
    %581 = vmatprep.subr.mxu0 0.0
    %582 = vmatpush1.xpose.msra.mxu0 %v574
    %583 = vmatprep.subr.mxu0 0.0
    %584 = vmatpush1.xpose.msra.mxu0 %v571
    %585 = vmatprep.subr.mxu0 0.0
    %586 = vmatpush1.xpose.msra.mxu0 %v568
    %587 = vmatprep.subr.mxu0 0.0
    %588 = vmatpush1.xpose.msra.mxu0 %v565
    %589 = vmatprep.subr.mxu0 0.0
    %590 = vmatpush1.xpose.msra.mxu0 %v562
    %591 = vmatprep.subr.mxu0 0.0
    %592 = vmatpush1.xpose.msra.mxu0 %v559
    %593 = vmatprep.subr.mxu0 0.0
    %594 = vmatpush1.xpose.msra.mxu0 %v556
    %595 = vmatprep.subr.mxu0 0.0
    %596 = vmatpush1.xpose.msra.mxu0 %v553
    %597 = vmatprep.subr.mxu0 0.0
    %598 = vmatpush1.xpose.msra.mxu0 %v550
    %599 = vmatprep.subr.mxu0 0.0
    %600 = vmatpush1.xpose.msra.mxu0 %v547
    %601 = vmatprep.subr.mxu0 0.0
    %602 = vmatpush1.xpose.msra.mxu0 %v544
    %603 = vmatprep.subr.mxu0 0.0
    %604 = vmatpush1.xpose.msra.mxu0 %v541
    %605 = vmatprep.subr.mxu0 0.0
    %606 = vmatpush1.xpose.msra.mxu0 %v538
    %607 = vmatprep.subr.mxu0 0.0
    %608 = vmatpush1.xpose.msra.mxu0 %v535
    %609 = vmatprep.subr.mxu0 0.0
    %610 = vmatpush1.xpose.msra.mxu0 %v532
    %611 = vmatprep.subr.mxu0 0.0
    %612 = vmatpush2.xpose.msra.mxu0 0.0
    %613 = vmatprep.subr.mxu0 0.0
    %614 = vmatpush2.xpose.msra.mxu0 0.0
    %615 = vmatprep.subr.mxu0 0.0
    %616 = vmatpush2.xpose.msra.mxu0 0.0
    %617 = vmatprep.subr.mxu0 0.0
    %618 = vmatpush2.xpose.msra.mxu0 0.0
    %619 = vmatprep.subr.mxu0 0.0
    %620 = vmatpush2.xpose.msra.mxu0 0.0
    %621 = vmatprep.subr.mxu0 0.0
    %622 = vmatpush2.xpose.msra.mxu0 0.0
    %623 = vmatprep.subr.mxu0 0.0
    %624 = vmatpush2.xpose.msra.mxu0 0.0
    %625 = vmatprep.subr.mxu0 0.0
    %626 = vmatpush2.xpose.msra.mxu0 0.0
    %627 = vmatprep.subr.mxu0 0.0
    %628 = vmatpush2.xpose.msra.mxu0 0.0
    %629 = vmatprep.subr.mxu0 0.0
    %630 = vmatpush2.xpose.msra.mxu0 0.0
    %631 = vmatprep.subr.mxu0 0.0
    %632 = vmatpush2.xpose.msra.mxu0 0.0
    %633 = vmatprep.subr.mxu0 0.0
    %634 = vmatpush2.xpose.msra.mxu0 0.0
    %635 = vmatprep.subr.mxu0 0.0
    %636 = vmatpush2.xpose.msra.mxu0 0.0
    %637 = vmatprep.subr.mxu0 0.0
    %638 = vmatpush2.xpose.msra.mxu0 0.0
    %639 = vmatprep.subr.mxu0 0.0
    %640 = vmatpush2.xpose.msra.mxu0 0.0
    %641 = vmatprep.subr.mxu0 0.0
    %642 = vmatpush2.xpose.msra.mxu0 0.0
    %643 = vmatprep.mubr.f32.mxu0 0.0
    %644 = vmatmul.mubr.f32.gmra.mxu0 %v529
    %v645 = vpop.f32.mrf.mxu0
    %v646 = vadd.f32 0.0, %v645
    %v647 = vpop.f32.mrf.mxu0
    %648 = vdwg.mxu0
    %v649 = vsel %vm288, %v286, 0
    %v652 = vsel %vm288, %v77, 0
    %v655 = vsel %vm288, %v78, 0
    %v658 = vsel %vm288, %v79, 0
    %v661 = vsel %vm288, %v80, 0
    %v664 = vsel %vm288, %v81, 0
    %v667 = vsel %vm288, %v82, 0
    %v670 = vsel %vm288, %v83, 0
    %v673 = vsel %vm288, %v84, 0
    %v676 = vsel %vm288, %v85, 0
    %v679 = vsel %vm288, %v86, 0
    %v682 = vsel %vm288, %v87, 0
    %v685 = vsel %vm288, %v88, 0
    %v688 = vsel %vm288, %v89, 0
    %v691 = vsel %vm288, %v90, 0
    %v694 = vsel %vm288, %v91, 0
    %v697 = vsel %vm288, %v92, 0
    %699 = vmatprep.subr.mxu0 0.0
    %700 = vmatpush1.xpose.msra.mxu0 %v697
    %701 = vmatprep.subr.mxu0 0.0
    %702 = vmatpush1.xpose.msra.mxu0 %v694
    %703 = vmatprep.subr.mxu0 0.0
    %704 = vmatpush1.xpose.msra.mxu0 %v691
    %705 = vmatprep.subr.mxu0 0.0
    %706 = vmatpush1.xpose.msra.mxu0 %v688
    %707 = vmatprep.subr.mxu0 0.0
    %708 = vmatpush1.xpose.msra.mxu0 %v685
    %709 = vmatprep.subr.mxu0 0.0
    %710 = vmatpush1.xpose.msra.mxu0 %v682
    %711 = vmatprep.subr.mxu0 0.0
    %712 = vmatpush1.xpose.msra.mxu0 %v679
    %713 = vmatprep.subr.mxu0 0.0
    %714 = vmatpush1.xpose.msra.mxu0 %v676
    %715 = vmatprep.subr.mxu0 0.0
    %716 = vmatpush1.xpose.msra.mxu0 %v673
    %717 = vmatprep.subr.mxu0 0.0
    %718 = vmatpush1.xpose.msra.mxu0 %v670
    %719 = vmatprep.subr.mxu0 0.0
    %720 = vmatpush1.xpose.msra.mxu0 %v667
    %721 = vmatprep.subr.mxu0 0.0
    %722 = vmatpush1.xpose.msra.mxu0 %v664
    %723 = vmatprep.subr.mxu0 0.0
    %724 = vmatpush1.xpose.msra.mxu0 %v661
    %725 = vmatprep.subr.mxu0 0.0
    %726 = vmatpush1.xpose.msra.mxu0 %v658
    %727 = vmatprep.subr.mxu0 0.0
    %728 = vmatpush1.xpose.msra.mxu0 %v655
    %729 = vmatprep.subr.mxu0 0.0
    %730 = vmatpush1.xpose.msra.mxu0 %v652
    %731 = vmatprep.subr.mxu0 0.0
    %732 = vmatpush2.xpose.msra.mxu0 0.0
    %733 = vmatprep.subr.mxu0 0.0
    %734 = vmatpush2.xpose.msra.mxu0 0.0
    %735 = vmatprep.subr.mxu0 0.0
    %736 = vmatpush2.xpose.msra.mxu0 0.0
    %737 = vmatprep.subr.mxu0 0.0
    %738 = vmatpush2.xpose.msra.mxu0 0.0
    %739 = vmatprep.subr.mxu0 0.0
    %740 = vmatpush2.xpose.msra.mxu0 0.0
    %741 = vmatprep.subr.mxu0 0.0
    %742 = vmatpush2.xpose.msra.mxu0 0.0
    %743 = vmatprep.subr.mxu0 0.0
    %744 = vmatpush2.xpose.msra.mxu0 0.0
    %745 = vmatprep.subr.mxu0 0.0
    %746 = vmatpush2.xpose.msra.mxu0 0.0
    %747 = vmatprep.subr.mxu0 0.0
    %748 = vmatpush2.xpose.msra.mxu0 0.0
    %749 = vmatprep.subr.mxu0 0.0
    %750 = vmatpush2.xpose.msra.mxu0 0.0
    %751 = vmatprep.subr.mxu0 0.0
    %752 = vmatpush2.xpose.msra.mxu0 0.0
    %753 = vmatprep.subr.mxu0 0.0
    %754 = vmatpush2.xpose.msra.mxu0 0.0
    %755 = vmatprep.subr.mxu0 0.0
    %756 = vmatpush2.xpose.msra.mxu0 0.0
    %757 = vmatprep.subr.mxu0 0.0
    %758 = vmatpush2.xpose.msra.mxu0 0.0
    %759 = vmatprep.subr.mxu0 0.0
    %760 = vmatpush2.xpose.msra.mxu0 0.0
    %761 = vmatprep.subr.mxu0 0.0
    %762 = vmatpush2.xpose.msra.mxu0 0.0
    %763 = vmatprep.mubr.f32.mxu0 0.0
    %764 = vmatmul.mubr.f32.gmra.mxu0 %v649
    %v765 = vpop.f32.mrf.mxu0
    %v766 = vadd.f32 0.0, %v765
    %v767 = vpop.f32.mrf.mxu0
    %768 = vdwg.mxu0
    %v769 = vsel %vm288, %v269, 0
    %v772 = vsel %vm288, %v93, 0
    %v775 = vsel %vm288, %v94, 0
    %v778 = vsel %vm288, %v95, 0
    %v781 = vsel %vm288, %v96, 0
    %v784 = vsel %vm288, %v97, 0
    %v787 = vsel %vm288, %v98, 0
    %v790 = vsel %vm288, %v99, 0
    %v793 = vsel %vm288, %v100, 0
    %v796 = vsel %vm288, %v101, 0
    %v799 = vsel %vm288, %v102, 0
    %v802 = vsel %vm288, %v103, 0
    %v805 = vsel %vm288, %v104, 0
    %v808 = vsel %vm288, %v105, 0
    %v811 = vsel %vm288, %v106, 0
    %v814 = vsel %vm288, %v107, 0
    %v817 = vsel %vm288, %v108, 0
    %819 = vmatprep.subr.mxu0 0.0
    %820 = vmatpush1.xpose.msra.mxu0 %v817
    %821 = vmatprep.subr.mxu0 0.0
    %822 = vmatpush1.xpose.msra.mxu0 %v814
    %823 = vmatprep.subr.mxu0 0.0
    %824 = vmatpush1.xpose.msra.mxu0 %v811
    %825 = vmatprep.subr.mxu0 0.0
    %826 = vmatpush1.xpose.msra.mxu0 %v808
    %827 = vmatprep.subr.mxu0 0.0
    %828 = vmatpush1.xpose.msra.mxu0 %v805
    %829 = vmatprep.subr.mxu0 0.0
    %830 = vmatpush1.xpose.msra.mxu0 %v802
    %831 = vmatprep.subr.mxu0 0.0
    %832 = vmatpush1.xpose.msra.mxu0 %v799
    %833 = vmatprep.subr.mxu0 0.0
    %834 = vmatpush1.xpose.msra.mxu0 %v796
    %835 = vmatprep.subr.mxu0 0.0
    %836 = vmatpush1.xpose.msra.mxu0 %v793
    %837 = vmatprep.subr.mxu0 0.0
    %838 = vmatpush1.xpose.msra.mxu0 %v790
    %839 = vmatprep.subr.mxu0 0.0
    %840 = vmatpush1.xpose.msra.mxu0 %v787
    %841 = vmatprep.subr.mxu0 0.0
    %842 = vmatpush1.xpose.msra.mxu0 %v784
    %843 = vmatprep.subr.mxu0 0.0
    %844 = vmatpush1.xpose.msra.mxu0 %v781
    %845 = vmatprep.subr.mxu0 0.0
    %846 = vmatpush1.xpose.msra.mxu0 %v778
    %847 = vmatprep.subr.mxu0 0.0
    %848 = vmatpush1.xpose.msra.mxu0 %v775
    %849 = vmatprep.subr.mxu0 0.0
    %850 = vmatpush1.xpose.msra.mxu0 %v772
    %851 = vmatprep.subr.mxu0 0.0
    %852 = vmatpush2.xpose.msra.mxu0 0.0
    %853 = vmatprep.subr.mxu0 0.0
    %854 = vmatpush2.xpose.msra.mxu0 0.0
    %855 = vmatprep.subr.mxu0 0.0
    %856 = vmatpush2.xpose.msra.mxu0 0.0
    %857 = vmatprep.subr.mxu0 0.0
    %858 = vmatpush2.xpose.msra.mxu0 0.0
    %859 = vmatprep.subr.mxu0 0.0
    %860 = vmatpush2.xpose.msra.mxu0 0.0
    %861 = vmatprep.subr.mxu0 0.0
    %862 = vmatpush2.xpose.msra.mxu0 0.0
    %863 = vmatprep.subr.mxu0 0.0
    %864 = vmatpush2.xpose.msra.mxu0 0.0
    %865 = vmatprep.subr.mxu0 0.0
    %866 = vmatpush2.xpose.msra.mxu0 0.0
    %867 = vmatprep.subr.mxu0 0.0
    %868 = vmatpush2.xpose.msra.mxu0 0.0
    %869 = vmatprep.subr.mxu0 0.0
    %870 = vmatpush2.xpose.msra.mxu0 0.0
    %871 = vmatprep.subr.mxu0 0.0
    %872 = vmatpush2.xpose.msra.mxu0 0.0
    %873 = vmatprep.subr.mxu0 0.0
    %874 = vmatpush2.xpose.msra.mxu0 0.0
    %875 = vmatprep.subr.mxu0 0.0
    %876 = vmatpush2.xpose.msra.mxu0 0.0
    %877 = vmatprep.subr.mxu0 0.0
    %878 = vmatpush2.xpose.msra.mxu0 0.0
    %879 = vmatprep.subr.mxu0 0.0
    %880 = vmatpush2.xpose.msra.mxu0 0.0
    %881 = vmatprep.subr.mxu0 0.0
    %882 = vmatpush2.xpose.msra.mxu0 0.0
    %883 = vmatprep.mubr.f32.mxu0 0.0
    %884 = vmatmul.mubr.f32.gmra.mxu0 %v769
    %v885 = vpop.f32.mrf.mxu0
    %v886 = vadd.f32 0.0, %v885
    %v887 = vpop.f32.mrf.mxu0
    %888 = vdwg.mxu0
    %v889 = vsel %vm288, %v283, 0
    %v892 = vsel %vm288, %v109, 0
    %v895 = vsel %vm288, %v110, 0
    %v898 = vsel %vm288, %v111, 0
    %v901 = vsel %vm288, %v112, 0
    %v904 = vsel %vm288, %v113, 0
    %v907 = vsel %vm288, %v114, 0
    %v910 = vsel %vm288, %v115, 0
    %v913 = vsel %vm288, %v116, 0
    %v916 = vsel %vm288, %v117, 0
    %v919 = vsel %vm288, %v118, 0
    %v922 = vsel %vm288, %v119, 0
    %v925 = vsel %vm288, %v120, 0
    %v928 = vsel %vm288, %v121, 0
    %v931 = vsel %vm288, %v122, 0
    %v934 = vsel %vm288, %v123, 0
    %v937 = vsel %vm288, %v124, 0
    %939 = vmatprep.subr.mxu0 0.0
    %940 = vmatpush1.xpose.msra.mxu0 %v937
    %941 = vmatprep.subr.mxu0 0.0
    %942 = vmatpush1.xpose.msra.mxu0 %v934
    %943 = vmatprep.subr.mxu0 0.0
    %944 = vmatpush1.xpose.msra.mxu0 %v931
    %945 = vmatprep.subr.mxu0 0.0
    %946 = vmatpush1.xpose.msra.mxu0 %v928
    %947 = vmatprep.subr.mxu0 0.0
    %948 = vmatpush1.xpose.msra.mxu0 %v925
    %949 = vmatprep.subr.mxu0 0.0
    %950 = vmatpush1.xpose.msra.mxu0 %v922
    %951 = vmatprep.subr.mxu0 0.0
    %952 = vmatpush1.xpose.msra.mxu0 %v919
    %953 = vmatprep.subr.mxu0 0.0
    %954 = vmatpush1.xpose.msra.mxu0 %v916
    %955 = vmatprep.subr.mxu0 0.0
    %956 = vmatpush1.xpose.msra.mxu0 %v913
    %957 = vmatprep.subr.mxu0 0.0
    %958 = vmatpush1.xpose.msra.mxu0 %v910
    %959 = vmatprep.subr.mxu0 0.0
    %960 = vmatpush1.xpose.msra.mxu0 %v907
    %961 = vmatprep.subr.mxu0 0.0
    %962 = vmatpush1.xpose.msra.mxu0 %v904
    %963 = vmatprep.subr.mxu0 0.0
    %964 = vmatpush1.xpose.msra.mxu0 %v901
    %965 = vmatprep.subr.mxu0 0.0
    %966 = vmatpush1.xpose.msra.mxu0 %v898
    %967 = vmatprep.subr.mxu0 0.0
    %968 = vmatpush1.xpose.msra.mxu0 %v895
    %969 = vmatprep.subr.mxu0 0.0
    %970 = vmatpush1.xpose.msra.mxu0 %v892
    %971 = vmatprep.subr.mxu0 0.0
    %972 = vmatpush2.xpose.msra.mxu0 0.0
    %973 = vmatprep.subr.mxu0 0.0
    %974 = vmatpush2.xpose.msra.mxu0 0.0
    %975 = vmatprep.subr.mxu0 0.0
    %976 = vmatpush2.xpose.msra.mxu0 0.0
    %977 = vmatprep.subr.mxu0 0.0
    %978 = vmatpush2.xpose.msra.mxu0 0.0
    %979 = vmatprep.subr.mxu0 0.0
    %980 = vmatpush2.xpose.msra.mxu0 0.0
    %981 = vmatprep.subr.mxu0 0.0
    %982 = vmatpush2.xpose.msra.mxu0 0.0
    %983 = vmatprep.subr.mxu0 0.0
    %984 = vmatpush2.xpose.msra.mxu0 0.0
    %985 = vmatprep.subr.mxu0 0.0
    %986 = vmatpush2.xpose.msra.mxu0 0.0
    %987 = vmatprep.subr.mxu0 0.0
    %988 = vmatpush2.xpose.msra.mxu0 0.0
    %989 = vmatprep.subr.mxu0 0.0
    %990 = vmatpush2.xpose.msra.mxu0 0.0
    %991 = vmatprep.subr.mxu0 0.0
    %992 = vmatpush2.xpose.msra.mxu0 0.0
    %993 = vmatprep.subr.mxu0 0.0
    %994 = vmatpush2.xpose.msra.mxu0 0.0
    %995 = vmatprep.subr.mxu0 0.0
    %996 = vmatpush2.xpose.msra.mxu0 0.0
    %997 = vmatprep.subr.mxu0 0.0
    %998 = vmatpush2.xpose.msra.mxu0 0.0
    %999 = vmatprep.subr.mxu0 0.0
    %1000 = vmatpush2.xpose.msra.mxu0 0.0
    %1001 = vmatprep.subr.mxu0 0.0
    %1002 = vmatpush2.xpose.msra.mxu0 0.0
    %1003 = vmatprep.mubr.f32.mxu0 0.0
    %1004 = vmatmul.mubr.f32.gmra.mxu0 %v889
    %v1005 = vpop.f32.mrf.mxu0
    %v1006 = vadd.f32 0.0, %v1005
    %v1007 = vpop.f32.mrf.mxu0
    %1008 = vdwg.mxu0
    %v1009 = vsel %vm288, %v285, 0
    %v1012 = vsel %vm288, %v125, 0
    %v1015 = vsel %vm288, %v126, 0
    %v1018 = vsel %vm288, %v127, 0
    %v1021 = vsel %vm288, %v128, 0
    %v1024 = vsel %vm288, %v129, 0
    %v1027 = vsel %vm288, %v130, 0
    %v1030 = vsel %vm288, %v131, 0
    %v1033 = vsel %vm288, %v132, 0
    %v1036 = vsel %vm288, %v133, 0
    %v1039 = vsel %vm288, %v134, 0
    %v1042 = vsel %vm288, %v135, 0
    %v1045 = vsel %vm288, %v136, 0
    %v1048 = vsel %vm288, %v137, 0
    %v1051 = vsel %vm288, %v138, 0
    %v1054 = vsel %vm288, %v139, 0
    %v1057 = vsel %vm288, %v140, 0
    %1059 = vmatprep.subr.mxu0 0.0
    %1060 = vmatpush1.xpose.msra.mxu0 %v1057
    %1061 = vmatprep.subr.mxu0 0.0
    %1062 = vmatpush1.xpose.msra.mxu0 %v1054
    %1063 = vmatprep.subr.mxu0 0.0
    %1064 = vmatpush1.xpose.msra.mxu0 %v1051
    %1065 = vmatprep.subr.mxu0 0.0
    %1066 = vmatpush1.xpose.msra.mxu0 %v1048
    %1067 = vmatprep.subr.mxu0 0.0
    %1068 = vmatpush1.xpose.msra.mxu0 %v1045
    %1069 = vmatprep.subr.mxu0 0.0
    %1070 = vmatpush1.xpose.msra.mxu0 %v1042
    %1071 = vmatprep.subr.mxu0 0.0
    %1072 = vmatpush1.xpose.msra.mxu0 %v1039
    %1073 = vmatprep.subr.mxu0 0.0
    %1074 = vmatpush1.xpose.msra.mxu0 %v1036
    %1075 = vmatprep.subr.mxu0 0.0
    %1076 = vmatpush1.xpose.msra.mxu0 %v1033
    %1077 = vmatprep.subr.mxu0 0.0
    %1078 = vmatpush1.xpose.msra.mxu0 %v1030
    %1079 = vmatprep.subr.mxu0 0.0
    %1080 = vmatpush1.xpose.msra.mxu0 %v1027
    %1081 = vmatprep.subr.mxu0 0.0
    %1082 = vmatpush1.xpose.msra.mxu0 %v1024
    %1083 = vmatprep.subr.mxu0 0.0
    %1084 = vmatpush1.xpose.msra.mxu0 %v1021
    %1085 = vmatprep.subr.mxu0 0.0
    %1086 = vmatpush1.xpose.msra.mxu0 %v1018
    %1087 = vmatprep.subr.mxu0 0.0
    %1088 = vmatpush1.xpose.msra.mxu0 %v1015
    %1089 = vmatprep.subr.mxu0 0.0
    %1090 = vmatpush1.xpose.msra.mxu0 %v1012
    %1091 = vmatprep.subr.mxu0 0.0
    %1092 = vmatpush2.xpose.msra.mxu0 0.0
    %1093 = vmatprep.subr.mxu0 0.0
    %1094 = vmatpush2.xpose.msra.mxu0 0.0
    %1095 = vmatprep.subr.mxu0 0.0
    %1096 = vmatpush2.xpose.msra.mxu0 0.0
    %1097 = vmatprep.subr.mxu0 0.0
    %1098 = vmatpush2.xpose.msra.mxu0 0.0
    %1099 = vmatprep.subr.mxu0 0.0
    %1100 = vmatpush2.xpose.msra.mxu0 0.0
    %1101 = vmatprep.subr.mxu0 0.0
    %1102 = vmatpush2.xpose.msra.mxu0 0.0
    %1103 = vmatprep.subr.mxu0 0.0
    %1104 = vmatpush2.xpose.msra.mxu0 0.0
    %1105 = vmatprep.subr.mxu0 0.0
    %1106 = vmatpush2.xpose.msra.mxu0 0.0
    %1107 = vmatprep.subr.mxu0 0.0
    %1108 = vmatpush2.xpose.msra.mxu0 0.0
    %1109 = vmatprep.subr.mxu0 0.0
    %1110 = vmatpush2.xpose.msra.mxu0 0.0
    %1111 = vmatprep.subr.mxu0 0.0
    %1112 = vmatpush2.xpose.msra.mxu0 0.0
    %1113 = vmatprep.subr.mxu0 0.0
    %1114 = vmatpush2.xpose.msra.mxu0 0.0
    %1115 = vmatprep.subr.mxu0 0.0
    %1116 = vmatpush2.xpose.msra.mxu0 0.0
    %1117 = vmatprep.subr.mxu0 0.0
    %1118 = vmatpush2.xpose.msra.mxu0 0.0
    %1119 = vmatprep.subr.mxu0 0.0
    %1120 = vmatpush2.xpose.msra.mxu0 0.0
    %1121 = vmatprep.subr.mxu0 0.0
    %1122 = vmatpush2.xpose.msra.mxu0 0.0
    %1123 = vmatprep.mubr.f32.mxu0 0.0
    %1124 = vmatmul.mubr.f32.gmra.mxu0 %v1009
    %v1125 = vpop.f32.mrf.mxu0
    %v1126 = vadd.f32 0.0, %v1125
    %v1127 = vpop.f32.mrf.mxu0
    %1128 = vdwg.mxu0
    %v1129 = vsel %vm288, %v287, 0
    %v1132 = vsel %vm288, %v141, 0
    %v1135 = vsel %vm288, %v142, 0
    %v1138 = vsel %vm288, %v143, 0
    %v1141 = vsel %vm288, %v144, 0
    %v1144 = vsel %vm288, %v145, 0
    %v1147 = vsel %vm288, %v146, 0
    %v1150 = vsel %vm288, %v147, 0
    %v1153 = vsel %vm288, %v148, 0
    %v1156 = vsel %vm288, %v149, 0
    %v1159 = vsel %vm288, %v150, 0
    %v1162 = vsel %vm288, %v151, 0
    %v1165 = vsel %vm288, %v152, 0
    %v1168 = vsel %vm288, %v153, 0
    %v1171 = vsel %vm288, %v154, 0
    %v1174 = vsel %vm288, %v155, 0
    %v1177 = vsel %vm288, %v156, 0
    %1179 = vmatprep.subr.mxu0 0.0
    %1180 = vmatpush1.xpose.msra.mxu0 %v1177
    %1181 = vmatprep.subr.mxu0 0.0
    %1182 = vmatpush1.xpose.msra.mxu0 %v1174
    %1183 = vmatprep.subr.mxu0 0.0
    %1184 = vmatpush1.xpose.msra.mxu0 %v1171
    %1185 = vmatprep.subr.mxu0 0.0
    %1186 = vmatpush1.xpose.msra.mxu0 %v1168
    %1187 = vmatprep.subr.mxu0 0.0
    %1188 = vmatpush1.xpose.msra.mxu0 %v1165
    %1189 = vmatprep.subr.mxu0 0.0
    %1190 = vmatpush1.xpose.msra.mxu0 %v1162
    %1191 = vmatprep.subr.mxu0 0.0
    %1192 = vmatpush1.xpose.msra.mxu0 %v1159
    %1193 = vmatprep.subr.mxu0 0.0
    %1194 = vmatpush1.xpose.msra.mxu0 %v1156
    %1195 = vmatprep.subr.mxu0 0.0
    %1196 = vmatpush1.xpose.msra.mxu0 %v1153
    %1197 = vmatprep.subr.mxu0 0.0
    %1198 = vmatpush1.xpose.msra.mxu0 %v1150
    %1199 = vmatprep.subr.mxu0 0.0
    %1200 = vmatpush1.xpose.msra.mxu0 %v1147
    %1201 = vmatprep.subr.mxu0 0.0
    %1202 = vmatpush1.xpose.msra.mxu0 %v1144
    %1203 = vmatprep.subr.mxu0 0.0
    %1204 = vmatpush1.xpose.msra.mxu0 %v1141
    %1205 = vmatprep.subr.mxu0 0.0
    %1206 = vmatpush1.xpose.msra.mxu0 %v1138
    %1207 = vmatprep.subr.mxu0 0.0
    %1208 = vmatpush1.xpose.msra.mxu0 %v1135
    %1209 = vmatprep.subr.mxu0 0.0
    %1210 = vmatpush1.xpose.msra.mxu0 %v1132
    %1211 = vmatprep.subr.mxu0 0.0
    %1212 = vmatpush2.xpose.msra.mxu0 0.0
    %1213 = vmatprep.subr.mxu0 0.0
    %1214 = vmatpush2.xpose.msra.mxu0 0.0
    %1215 = vmatprep.subr.mxu0 0.0
    %1216 = vmatpush2.xpose.msra.mxu0 0.0
    %1217 = vmatprep.subr.mxu0 0.0
    %1218 = vmatpush2.xpose.msra.mxu0 0.0
    %1219 = vmatprep.subr.mxu0 0.0
    %1220 = vmatpush2.xpose.msra.mxu0 0.0
    %1221 = vmatprep.subr.mxu0 0.0
    %1222 = vmatpush2.xpose.msra.mxu0 0.0
    %1223 = vmatprep.subr.mxu0 0.0
    %1224 = vmatpush2.xpose.msra.mxu0 0.0
    %1225 = vmatprep.subr.mxu0 0.0
    %1226 = vmatpush2.xpose.msra.mxu0 0.0
    %1227 = vmatprep.subr.mxu0 0.0
    %1228 = vmatpush2.xpose.msra.mxu0 0.0
    %1229 = vmatprep.subr.mxu0 0.0
    %1230 = vmatpush2.xpose.msra.mxu0 0.0
    %1231 = vmatprep.subr.mxu0 0.0
    %1232 = vmatpush2.xpose.msra.mxu0 0.0
    %1233 = vmatprep.subr.mxu0 0.0
    %1234 = vmatpush2.xpose.msra.mxu0 0.0
    %1235 = vmatprep.subr.mxu0 0.0
    %1236 = vmatpush2.xpose.msra.mxu0 0.0
    %1237 = vmatprep.subr.mxu0 0.0
    %1238 = vmatpush2.xpose.msra.mxu0 0.0
    %1239 = vmatprep.subr.mxu0 0.0
    %1240 = vmatpush2.xpose.msra.mxu0 0.0
    %1241 = vmatprep.subr.mxu0 0.0
    %1242 = vmatpush2.xpose.msra.mxu0 0.0
    %1243 = vmatprep.mubr.f32.mxu0 0.0
    %1244 = vmatmul.mubr.f32.gmra.mxu0 %v1129
    %v1245 = vpop.f32.mrf.mxu0
    %v1246 = vadd.f32 0.0, %v1245
    %v1247 = vpop.f32.mrf.mxu0
    %1248 = vdwg.mxu0
    %v1257 = vrot.slane %v526, 7
    %vm1258 = vcmask 1041409
    %v1259 = vsel %vm1258, %v1257, %v406
    %v1260 = vrot.slane %v646, 6
    %vm1261 = vcmask 1042434
    %v1262 = vsel %vm1261, %v1260, %v1259
    %v1263 = vrot.slane %v766, 5
    %vm1264 = vcmask 1043459
    %v1265 = vsel %vm1264, %v1263, %v1262
    %v1266 = vrot.slane %v886, 4
    %vm1267 = vcmask 1044484
    %v1268 = vsel %vm1267, %v1266, %v1265
    %v1269 = vrot.slane %v1006, 3
    %vm1270 = vcmask 1045509
    %v1271 = vsel %vm1270, %v1269, %v1268
    %v1272 = vrot.slane %v1126, 2
    %vm1273 = vcmask 1046534
    %v1274 = vsel %vm1273, %v1272, %v1271
    %v1275 = vrot.slane %v1246, 1
    %vm1276 = vcmask 1047559
    %v1277 = vsel %vm1276, %v1275, %v1274
    %v1279 = vsel %vm158, %v1277, -inf
    %1280 = vmax.xlane.f32.xlu0 %v1279
    %v1281 = vpop.xlane.xlu0 %1280
    %v1282 = vsub.f32 %v1279, %v1281
    %v1283 = vmul.f32 %v1282, 1.442695
    %v1284 = vpow.pop %v1283
    %1285 = vadd.xlane.f32.xlu0 %v1284
    %v1286 = vpop.xlane.xlu0 %1285
    %v1287 = vrcp.pop %v1286
    %v1288 = vmul.f32 %v1284, %v1287
    %v1290 = vcombine.high %v1288, %v1288
    %v1292 = vunpack.c.l.s4 1966171168
    %v1293 = vunpack.c.0.s8 %v1292
    %v1294 = vlaneseq
    %v1295 = vshrl.u32 %v1294, 7
    %v1296 = vsub.s32 %v1293, %v1295
    %v1297 = vrot.slane %v1288, %v1296
    %v1299 = vunpack.c.l.s4 1966171168
    %v1300 = vunpack.c.0.s8 %v1299
    %v1301 = vlaneseq
    %v1302 = vshrl.u32 %v1301, 7
    %v1303 = vsub.s32 %v1300, %v1302
    %v1304 = vrot.slane %v1290, %v1303
    %v1305 = vcombine.high %v1297, %v1297
    %v1306 = vcombine.high %v1304, %v1304
    %v1308 = vunpack.c.l.s4 1966171168
    %v1309 = vunpack.c.0.s8 %v1308
    %v1310 = vlaneseq
    %v1311 = vshrl.u32 %v1310, 7
    %v1312 = vsub.s32 %v1309, %v1311
    %v1313 = vrot.slane %v1297, %v1312
    %v1315 = vunpack.c.l.s4 1966171168
    %v1316 = vunpack.c.0.s8 %v1315
    %v1317 = vlaneseq
    %v1318 = vshrl.u32 %v1317, 7
    %v1319 = vsub.s32 %v1316, %v1318
    %v1320 = vrot.slane %v1304, %v1319
    %v1322 = vunpack.c.l.s4 1966171168
    %v1323 = vunpack.c.0.s8 %v1322
    %v1324 = vlaneseq
    %v1325 = vshrl.u32 %v1324, 7
    %v1326 = vsub.s32 %v1323, %v1325
    %v1327 = vrot.slane %v1305, %v1326
    %v1329 = vunpack.c.l.s4 1966171168
    %v1330 = vunpack.c.0.s8 %v1329
    %v1331 = vlaneseq
    %v1332 = vshrl.u32 %v1331, 7
    %v1333 = vsub.s32 %v1330, %v1332
    %v1334 = vrot.slane %v1306, %v1333
    %v1335 = vcombine.high %v1313, %v1313
    %v1336 = vcombine.high %v1320, %v1320
    %v1337 = vcombine.high %v1327, %v1327
    %v1338 = vcombine.high %v1334, %v1334
    %1347 = vmatprep.subr.mxu0 0.0
    %1348 = vmatpush1.msra.mxu0 %v44
    %1349 = vmatprep.subr.mxu0 0.0
    %1350 = vmatpush1.msra.mxu0 %v43
    %1351 = vmatprep.subr.mxu0 0.0
    %1352 = vmatpush1.msra.mxu0 %v42
    %1353 = vmatprep.subr.mxu0 0.0
    %1354 = vmatpush1.msra.mxu0 %v41
    %1355 = vmatprep.subr.mxu0 0.0
    %1356 = vmatpush1.msra.mxu0 %v40
    %1357 = vmatprep.subr.mxu0 0.0
    %1358 = vmatpush1.msra.mxu0 %v39
    %1359 = vmatprep.subr.mxu0 0.0
    %1360 = vmatpush1.msra.mxu0 %v38
    %1361 = vmatprep.subr.mxu0 0.0
    %1362 = vmatpush1.msra.mxu0 %v37
    %1363 = vmatprep.subr.mxu0 0.0
    %1364 = vmatpush1.msra.mxu0 %v36
    %1365 = vmatprep.subr.mxu0 0.0
    %1366 = vmatpush1.msra.mxu0 %v35
    %1367 = vmatprep.subr.mxu0 0.0
    %1368 = vmatpush1.msra.mxu0 %v34
    %1369 = vmatprep.subr.mxu0 0.0
    %1370 = vmatpush1.msra.mxu0 %v33
    %1371 = vmatprep.subr.mxu0 0.0
    %1372 = vmatpush1.msra.mxu0 %v32
    %1373 = vmatprep.subr.mxu0 0.0
    %1374 = vmatpush1.msra.mxu0 %v31
    %1375 = vmatprep.subr.mxu0 0.0
    %1376 = vmatpush1.msra.mxu0 %v30
    %1377 = vmatprep.subr.mxu0 0.0
    %1378 = vmatpush1.msra.mxu0 %v29
    %1379 = vmatprep.subr.mxu0 0.0
    %1380 = vmatpush2.msra.mxu0 0.0
    %1381 = vmatprep.subr.mxu0 0.0
    %1382 = vmatpush2.msra.mxu0 0.0
    %1383 = vmatprep.subr.mxu0 0.0
    %1384 = vmatpush2.msra.mxu0 0.0
    %1385 = vmatprep.subr.mxu0 0.0
    %1386 = vmatpush2.msra.mxu0 0.0
    %1387 = vmatprep.subr.mxu0 0.0
    %1388 = vmatpush2.msra.mxu0 0.0
    %1389 = vmatprep.subr.mxu0 0.0
    %1390 = vmatpush2.msra.mxu0 0.0
    %1391 = vmatprep.subr.mxu0 0.0
    %1392 = vmatpush2.msra.mxu0 0.0
    %1393 = vmatprep.subr.mxu0 0.0
    %1394 = vmatpush2.msra.mxu0 0.0
    %1395 = vmatprep.subr.mxu0 0.0
    %1396 = vmatpush2.msra.mxu0 0.0
    %1397 = vmatprep.subr.mxu0 0.0
    %1398 = vmatpush2.msra.mxu0 0.0
    %1399 = vmatprep.subr.mxu0 0.0
    %1400 = vmatpush2.msra.mxu0 0.0
    %1401 = vmatprep.subr.mxu0 0.0
    %1402 = vmatpush2.msra.mxu0 0.0
    %1403 = vmatprep.subr.mxu0 0.0
    %1404 = vmatpush2.msra.mxu0 0.0
    %1405 = vmatprep.subr.mxu0 0.0
    %1406 = vmatpush2.msra.mxu0 0.0
    %1407 = vmatprep.subr.mxu0 0.0
    %1408 = vmatpush2.msra.mxu0 0.0
    %1409 = vmatprep.subr.mxu0 0.0
    %1410 = vmatpush2.msra.mxu0 0.0
    %1411 = vmatprep.mubr.f32.mxu0 0.0
    %1412 = vmatmul.mubr.f32.gmra.mxu0 %v1313
    %v1413 = vpop.f32.mrf.mxu0
    %v1414 = vadd.f32 0.0, %v1413
    %v1415 = vpop.f32.mrf.mxu0
    %1416 = vdwg.mxu0
    %1417 = vmatprep.subr.mxu0 0.0
    %1418 = vmatpush1.msra.mxu0 %v60
    %1419 = vmatprep.subr.mxu0 0.0
    %1420 = vmatpush1.msra.mxu0 %v59
    %1421 = vmatprep.subr.mxu0 0.0
    %1422 = vmatpush1.msra.mxu0 %v58
    %1423 = vmatprep.subr.mxu0 0.0
    %1424 = vmatpush1.msra.mxu0 %v57
    %1425 = vmatprep.subr.mxu0 0.0
    %1426 = vmatpush1.msra.mxu0 %v56
    %1427 = vmatprep.subr.mxu0 0.0
    %1428 = vmatpush1.msra.mxu0 %v55
    %1429 = vmatprep.subr.mxu0 0.0
    %1430 = vmatpush1.msra.mxu0 %v54
    %1431 = vmatprep.subr.mxu0 0.0
    %1432 = vmatpush1.msra.mxu0 %v53
    %1433 = vmatprep.subr.mxu0 0.0
    %1434 = vmatpush1.msra.mxu0 %v52
    %1435 = vmatprep.subr.mxu0 0.0
    %1436 = vmatpush1.msra.mxu0 %v51
    %1437 = vmatprep.subr.mxu0 0.0
    %1438 = vmatpush1.msra.mxu0 %v50
    %1439 = vmatprep.subr.mxu0 0.0
    %1440 = vmatpush1.msra.mxu0 %v49
    %1441 = vmatprep.subr.mxu0 0.0
    %1442 = vmatpush1.msra.mxu0 %v48
    %1443 = vmatprep.subr.mxu0 0.0
    %1444 = vmatpush1.msra.mxu0 %v47
    %1445 = vmatprep.subr.mxu0 0.0
    %1446 = vmatpush1.msra.mxu0 %v46
    %1447 = vmatprep.subr.mxu0 0.0
    %1448 = vmatpush1.msra.mxu0 %v45
    %1449 = vmatprep.subr.mxu0 0.0
    %1450 = vmatpush2.msra.mxu0 0.0
    %1451 = vmatprep.subr.mxu0 0.0
    %1452 = vmatpush2.msra.mxu0 0.0
    %1453 = vmatprep.subr.mxu0 0.0
    %1454 = vmatpush2.msra.mxu0 0.0
    %1455 = vmatprep.subr.mxu0 0.0
    %1456 = vmatpush2.msra.mxu0 0.0
    %1457 = vmatprep.subr.mxu0 0.0
    %1458 = vmatpush2.msra.mxu0 0.0
    %1459 = vmatprep.subr.mxu0 0.0
    %1460 = vmatpush2.msra.mxu0 0.0
    %1461 = vmatprep.subr.mxu0 0.0
    %1462 = vmatpush2.msra.mxu0 0.0
    %1463 = vmatprep.subr.mxu0 0.0
    %1464 = vmatpush2.msra.mxu0 0.0
    %1465 = vmatprep.subr.mxu0 0.0
    %1466 = vmatpush2.msra.mxu0 0.0
    %1467 = vmatprep.subr.mxu0 0.0
    %1468 = vmatpush2.msra.mxu0 0.0
    %1469 = vmatprep.subr.mxu0 0.0
    %1470 = vmatpush2.msra.mxu0 0.0
    %1471 = vmatprep.subr.mxu0 0.0
    %1472 = vmatpush2.msra.mxu0 0.0
    %1473 = vmatprep.subr.mxu0 0.0
    %1474 = vmatpush2.msra.mxu0 0.0
    %1475 = vmatprep.subr.mxu0 0.0
    %1476 = vmatpush2.msra.mxu0 0.0
    %1477 = vmatprep.subr.mxu0 0.0
    %1478 = vmatpush2.msra.mxu0 0.0
    %1479 = vmatprep.subr.mxu0 0.0
    %1480 = vmatpush2.msra.mxu0 0.0
    %1481 = vmatprep.mubr.f32.mxu0 0.0
    %1482 = vmatmul.mubr.f32.gmra.mxu0 %v1327
    %v1483 = vpop.f32.mrf.mxu0
    %v1484 = vadd.f32 0.0, %v1483
    %v1485 = vpop.f32.mrf.mxu0
    %1486 = vdwg.mxu0
    %1487 = vmatprep.subr.mxu0 0.0
    %1488 = vmatpush1.msra.mxu0 %v76
    %1489 = vmatprep.subr.mxu0 0.0
    %1490 = vmatpush1.msra.mxu0 %v75
    %1491 = vmatprep.subr.mxu0 0.0
    %1492 = vmatpush1.msra.mxu0 %v74
    %1493 = vmatprep.subr.mxu0 0.0
    %1494 = vmatpush1.msra.mxu0 %v73
    %1495 = vmatprep.subr.mxu0 0.0
    %1496 = vmatpush1.msra.mxu0 %v72
    %1497 = vmatprep.subr.mxu0 0.0
    %1498 = vmatpush1.msra.mxu0 %v71
    %1499 = vmatprep.subr.mxu0 0.0
    %1500 = vmatpush1.msra.mxu0 %v70
    %1501 = vmatprep.subr.mxu0 0.0
    %1502 = vmatpush1.msra.mxu0 %v69
    %1503 = vmatprep.subr.mxu0 0.0
    %1504 = vmatpush1.msra.mxu0 %v68
    %1505 = vmatprep.subr.mxu0 0.0
    %1506 = vmatpush1.msra.mxu0 %v67
    %1507 = vmatprep.subr.mxu0 0.0
    %1508 = vmatpush1.msra.mxu0 %v66
    %1509 = vmatprep.subr.mxu0 0.0
    %1510 = vmatpush1.msra.mxu0 %v65
    %1511 = vmatprep.subr.mxu0 0.0
    %1512 = vmatpush1.msra.mxu0 %v64
    %1513 = vmatprep.subr.mxu0 0.0
    %1514 = vmatpush1.msra.mxu0 %v63
    %1515 = vmatprep.subr.mxu0 0.0
    %1516 = vmatpush1.msra.mxu0 %v62
    %1517 = vmatprep.subr.mxu0 0.0
    %1518 = vmatpush1.msra.mxu0 %v61
    %1519 = vmatprep.subr.mxu0 0.0
    %1520 = vmatpush2.msra.mxu0 0.0
    %1521 = vmatprep.subr.mxu0 0.0
    %1522 = vmatpush2.msra.mxu0 0.0
    %1523 = vmatprep.subr.mxu0 0.0
    %1524 = vmatpush2.msra.mxu0 0.0
    %1525 = vmatprep.subr.mxu0 0.0
    %1526 = vmatpush2.msra.mxu0 0.0
    %1527 = vmatprep.subr.mxu0 0.0
    %1528 = vmatpush2.msra.mxu0 0.0
    %1529 = vmatprep.subr.mxu0 0.0
    %1530 = vmatpush2.msra.mxu0 0.0
    %1531 = vmatprep.subr.mxu0 0.0
    %1532 = vmatpush2.msra.mxu0 0.0
    %1533 = vmatprep.subr.mxu0 0.0
    %1534 = vmatpush2.msra.mxu0 0.0
    %1535 = vmatprep.subr.mxu0 0.0
    %1536 = vmatpush2.msra.mxu0 0.0
    %1537 = vmatprep.subr.mxu0 0.0
    %1538 = vmatpush2.msra.mxu0 0.0
    %1539 = vmatprep.subr.mxu0 0.0
    %1540 = vmatpush2.msra.mxu0 0.0
    %1541 = vmatprep.subr.mxu0 0.0
    %1542 = vmatpush2.msra.mxu0 0.0
    %1543 = vmatprep.subr.mxu0 0.0
    %1544 = vmatpush2.msra.mxu0 0.0
    %1545 = vmatprep.subr.mxu0 0.0
    %1546 = vmatpush2.msra.mxu0 0.0
    %1547 = vmatprep.subr.mxu0 0.0
    %1548 = vmatpush2.msra.mxu0 0.0
    %1549 = vmatprep.subr.mxu0 0.0
    %1550 = vmatpush2.msra.mxu0 0.0
    %1551 = vmatprep.mubr.f32.mxu0 0.0
    %1552 = vmatmul.mubr.f32.gmra.mxu0 %v1335
    %v1553 = vpop.f32.mrf.mxu0
    %v1554 = vadd.f32 0.0, %v1553
    %v1555 = vpop.f32.mrf.mxu0
    %1556 = vdwg.mxu0
    %1557 = vmatprep.subr.mxu0 0.0
    %1558 = vmatpush1.msra.mxu0 %v92
    %1559 = vmatprep.subr.mxu0 0.0
    %1560 = vmatpush1.msra.mxu0 %v91
    %1561 = vmatprep.subr.mxu0 0.0
    %1562 = vmatpush1.msra.mxu0 %v90
    %1563 = vmatprep.subr.mxu0 0.0
    %1564 = vmatpush1.msra.mxu0 %v89
    %1565 = vmatprep.subr.mxu0 0.0
    %1566 = vmatpush1.msra.mxu0 %v88
    %1567 = vmatprep.subr.mxu0 0.0
    %1568 = vmatpush1.msra.mxu0 %v87
    %1569 = vmatprep.subr.mxu0 0.0
    %1570 = vmatpush1.msra.mxu0 %v86
    %1571 = vmatprep.subr.mxu0 0.0
    %1572 = vmatpush1.msra.mxu0 %v85
    %1573 = vmatprep.subr.mxu0 0.0
    %1574 = vmatpush1.msra.mxu0 %v84
    %1575 = vmatprep.subr.mxu0 0.0
    %1576 = vmatpush1.msra.mxu0 %v83
    %1577 = vmatprep.subr.mxu0 0.0
    %1578 = vmatpush1.msra.mxu0 %v82
    %1579 = vmatprep.subr.mxu0 0.0
    %1580 = vmatpush1.msra.mxu0 %v81
    %1581 = vmatprep.subr.mxu0 0.0
    %1582 = vmatpush1.msra.mxu0 %v80
    %1583 = vmatprep.subr.mxu0 0.0
    %1584 = vmatpush1.msra.mxu0 %v79
    %1585 = vmatprep.subr.mxu0 0.0
    %1586 = vmatpush1.msra.mxu0 %v78
    %1587 = vmatprep.subr.mxu0 0.0
    %1588 = vmatpush1.msra.mxu0 %v77
    %1589 = vmatprep.subr.mxu0 0.0
    %1590 = vmatpush2.msra.mxu0 0.0
    %1591 = vmatprep.subr.mxu0 0.0
    %1592 = vmatpush2.msra.mxu0 0.0
    %1593 = vmatprep.subr.mxu0 0.0
    %1594 = vmatpush2.msra.mxu0 0.0
    %1595 = vmatprep.subr.mxu0 0.0
    %1596 = vmatpush2.msra.mxu0 0.0
    %1597 = vmatprep.subr.mxu0 0.0
    %1598 = vmatpush2.msra.mxu0 0.0
    %1599 = vmatprep.subr.mxu0 0.0
    %1600 = vmatpush2.msra.mxu0 0.0
    %1601 = vmatprep.subr.mxu0 0.0
    %1602 = vmatpush2.msra.mxu0 0.0
    %1603 = vmatprep.subr.mxu0 0.0
    %1604 = vmatpush2.msra.mxu0 0.0
    %1605 = vmatprep.subr.mxu0 0.0
    %1606 = vmatpush2.msra.mxu0 0.0
    %1607 = vmatprep.subr.mxu0 0.0
    %1608 = vmatpush2.msra.mxu0 0.0
    %1609 = vmatprep.subr.mxu0 0.0
    %1610 = vmatpush2.msra.mxu0 0.0
    %1611 = vmatprep.subr.mxu0 0.0
    %1612 = vmatpush2.msra.mxu0 0.0
    %1613 = vmatprep.subr.mxu0 0.0
    %1614 = vmatpush2.msra.mxu0 0.0
    %1615 = vmatprep.subr.mxu0 0.0
    %1616 = vmatpush2.msra.mxu0 0.0
    %1617 = vmatprep.subr.mxu0 0.0
    %1618 = vmatpush2.msra.mxu0 0.0
    %1619 = vmatprep.subr.mxu0 0.0
    %1620 = vmatpush2.msra.mxu0 0.0
    %1621 = vmatprep.mubr.f32.mxu0 0.0
    %1622 = vmatmul.mubr.f32.gmra.mxu0 %v1337
    %v1623 = vpop.f32.mrf.mxu0
    %v1624 = vadd.f32 0.0, %v1623
    %v1625 = vpop.f32.mrf.mxu0
    %1626 = vdwg.mxu0
    %1627 = vmatprep.subr.mxu0 0.0
    %1628 = vmatpush1.msra.mxu0 %v108
    %1629 = vmatprep.subr.mxu0 0.0
    %1630 = vmatpush1.msra.mxu0 %v107
    %1631 = vmatprep.subr.mxu0 0.0
    %1632 = vmatpush1.msra.mxu0 %v106
    %1633 = vmatprep.subr.mxu0 0.0
    %1634 = vmatpush1.msra.mxu0 %v105
    %1635 = vmatprep.subr.mxu0 0.0
    %1636 = vmatpush1.msra.mxu0 %v104
    %1637 = vmatprep.subr.mxu0 0.0
    %1638 = vmatpush1.msra.mxu0 %v103
    %1639 = vmatprep.subr.mxu0 0.0
    %1640 = vmatpush1.msra.mxu0 %v102
    %1641 = vmatprep.subr.mxu0 0.0
    %1642 = vmatpush1.msra.mxu0 %v101
    %1643 = vmatprep.subr.mxu0 0.0
    %1644 = vmatpush1.msra.mxu0 %v100
    %1645 = vmatprep.subr.mxu0 0.0
    %1646 = vmatpush1.msra.mxu0 %v99
    %1647 = vmatprep.subr.mxu0 0.0
    %1648 = vmatpush1.msra.mxu0 %v98
    %1649 = vmatprep.subr.mxu0 0.0
    %1650 = vmatpush1.msra.mxu0 %v97
    %1651 = vmatprep.subr.mxu0 0.0
    %1652 = vmatpush1.msra.mxu0 %v96
    %1653 = vmatprep.subr.mxu0 0.0
    %1654 = vmatpush1.msra.mxu0 %v95
    %1655 = vmatprep.subr.mxu0 0.0
    %1656 = vmatpush1.msra.mxu0 %v94
    %1657 = vmatprep.subr.mxu0 0.0
    %1658 = vmatpush1.msra.mxu0 %v93
    %1659 = vmatprep.subr.mxu0 0.0
    %1660 = vmatpush2.msra.mxu0 0.0
    %1661 = vmatprep.subr.mxu0 0.0
    %1662 = vmatpush2.msra.mxu0 0.0
    %1663 = vmatprep.subr.mxu0 0.0
    %1664 = vmatpush2.msra.mxu0 0.0
    %1665 = vmatprep.subr.mxu0 0.0
    %1666 = vmatpush2.msra.mxu0 0.0
    %1667 = vmatprep.subr.mxu0 0.0
    %1668 = vmatpush2.msra.mxu0 0.0
    %1669 = vmatprep.subr.mxu0 0.0
    %1670 = vmatpush2.msra.mxu0 0.0
    %1671 = vmatprep.subr.mxu0 0.0
    %1672 = vmatpush2.msra.mxu0 0.0
    %1673 = vmatprep.subr.mxu0 0.0
    %1674 = vmatpush2.msra.mxu0 0.0
    %1675 = vmatprep.subr.mxu0 0.0
    %1676 = vmatpush2.msra.mxu0 0.0
    %1677 = vmatprep.subr.mxu0 0.0
    %1678 = vmatpush2.msra.mxu0 0.0
    %1679 = vmatprep.subr.mxu0 0.0
    %1680 = vmatpush2.msra.mxu0 0.0
    %1681 = vmatprep.subr.mxu0 0.0
    %1682 = vmatpush2.msra.mxu0 0.0
    %1683 = vmatprep.subr.mxu0 0.0
    %1684 = vmatpush2.msra.mxu0 0.0
    %1685 = vmatprep.subr.mxu0 0.0
    %1686 = vmatpush2.msra.mxu0 0.0
    %1687 = vmatprep.subr.mxu0 0.0
    %1688 = vmatpush2.msra.mxu0 0.0
    %1689 = vmatprep.subr.mxu0 0.0
    %1690 = vmatpush2.msra.mxu0 0.0
    %1691 = vmatprep.mubr.f32.mxu0 0.0
    %1692 = vmatmul.mubr.f32.gmra.mxu0 %v1320
    %v1693 = vpop.f32.mrf.mxu0
    %v1694 = vadd.f32 0.0, %v1693
    %v1695 = vpop.f32.mrf.mxu0
    %1696 = vdwg.mxu0
    %1697 = vmatprep.subr.mxu0 0.0
    %1698 = vmatpush1.msra.mxu0 %v124
    %1699 = vmatprep.subr.mxu0 0.0
    %1700 = vmatpush1.msra.mxu0 %v123
    %1701 = vmatprep.subr.mxu0 0.0
    %1702 = vmatpush1.msra.mxu0 %v122
    %1703 = vmatprep.subr.mxu0 0.0
    %1704 = vmatpush1.msra.mxu0 %v121
    %1705 = vmatprep.subr.mxu0 0.0
    %1706 = vmatpush1.msra.mxu0 %v120
    %1707 = vmatprep.subr.mxu0 0.0
    %1708 = vmatpush1.msra.mxu0 %v119
    %1709 = vmatprep.subr.mxu0 0.0
    %1710 = vmatpush1.msra.mxu0 %v118
    %1711 = vmatprep.subr.mxu0 0.0
    %1712 = vmatpush1.msra.mxu0 %v117
    %1713 = vmatprep.subr.mxu0 0.0
    %1714 = vmatpush1.msra.mxu0 %v116
    %1715 = vmatprep.subr.mxu0 0.0
    %1716 = vmatpush1.msra.mxu0 %v115
    %1717 = vmatprep.subr.mxu0 0.0
    %1718 = vmatpush1.msra.mxu0 %v114
    %1719 = vmatprep.subr.mxu0 0.0
    %1720 = vmatpush1.msra.mxu0 %v113
    %1721 = vmatprep.subr.mxu0 0.0
    %1722 = vmatpush1.msra.mxu0 %v112
    %1723 = vmatprep.subr.mxu0 0.0
    %1724 = vmatpush1.msra.mxu0 %v111
    %1725 = vmatprep.subr.mxu0 0.0
    %1726 = vmatpush1.msra.mxu0 %v110
    %1727 = vmatprep.subr.mxu0 0.0
    %1728 = vmatpush1.msra.mxu0 %v109
    %1729 = vmatprep.subr.mxu0 0.0
    %1730 = vmatpush2.msra.mxu0 0.0
    %1731 = vmatprep.subr.mxu0 0.0
    %1732 = vmatpush2.msra.mxu0 0.0
    %1733 = vmatprep.subr.mxu0 0.0
    %1734 = vmatpush2.msra.mxu0 0.0
    %1735 = vmatprep.subr.mxu0 0.0
    %1736 = vmatpush2.msra.mxu0 0.0
    %1737 = vmatprep.subr.mxu0 0.0
    %1738 = vmatpush2.msra.mxu0 0.0
    %1739 = vmatprep.subr.mxu0 0.0
    %1740 = vmatpush2.msra.mxu0 0.0
    %1741 = vmatprep.subr.mxu0 0.0
    %1742 = vmatpush2.msra.mxu0 0.0
    %1743 = vmatprep.subr.mxu0 0.0
    %1744 = vmatpush2.msra.mxu0 0.0
    %1745 = vmatprep.subr.mxu0 0.0
    %1746 = vmatpush2.msra.mxu0 0.0
    %1747 = vmatprep.subr.mxu0 0.0
    %1748 = vmatpush2.msra.mxu0 0.0
    %1749 = vmatprep.subr.mxu0 0.0
    %1750 = vmatpush2.msra.mxu0 0.0
    %1751 = vmatprep.subr.mxu0 0.0
    %1752 = vmatpush2.msra.mxu0 0.0
    %1753 = vmatprep.subr.mxu0 0.0
    %1754 = vmatpush2.msra.mxu0 0.0
    %1755 = vmatprep.subr.mxu0 0.0
    %1756 = vmatpush2.msra.mxu0 0.0
    %1757 = vmatprep.subr.mxu0 0.0
    %1758 = vmatpush2.msra.mxu0 0.0
    %1759 = vmatprep.subr.mxu0 0.0
    %1760 = vmatpush2.msra.mxu0 0.0
    %1761 = vmatprep.mubr.f32.mxu0 0.0
    %1762 = vmatmul.mubr.f32.gmra.mxu0 %v1334
    %v1763 = vpop.f32.mrf.mxu0
    %v1764 = vadd.f32 0.0, %v1763
    %v1765 = vpop.f32.mrf.mxu0
    %1766 = vdwg.mxu0
    %1767 = vmatprep.subr.mxu0 0.0
    %1768 = vmatpush1.msra.mxu0 %v140
    %1769 = vmatprep.subr.mxu0 0.0
    %1770 = vmatpush1.msra.mxu0 %v139
    %1771 = vmatprep.subr.mxu0 0.0
    %1772 = vmatpush1.msra.mxu0 %v138
    %1773 = vmatprep.subr.mxu0 0.0
    %1774 = vmatpush1.msra.mxu0 %v137
    %1775 = vmatprep.subr.mxu0 0.0
    %1776 = vmatpush1.msra.mxu0 %v136
    %1777 = vmatprep.subr.mxu0 0.0
    %1778 = vmatpush1.msra.mxu0 %v135
    %1779 = vmatprep.subr.mxu0 0.0
    %1780 = vmatpush1.msra.mxu0 %v134
    %1781 = vmatprep.subr.mxu0 0.0
    %1782 = vmatpush1.msra.mxu0 %v133
    %1783 = vmatprep.subr.mxu0 0.0
    %1784 = vmatpush1.msra.mxu0 %v132
    %1785 = vmatprep.subr.mxu0 0.0
    %1786 = vmatpush1.msra.mxu0 %v131
    %1787 = vmatprep.subr.mxu0 0.0
    %1788 = vmatpush1.msra.mxu0 %v130
    %1789 = vmatprep.subr.mxu0 0.0
    %1790 = vmatpush1.msra.mxu0 %v129
    %1791 = vmatprep.subr.mxu0 0.0
    %1792 = vmatpush1.msra.mxu0 %v128
    %1793 = vmatprep.subr.mxu0 0.0
    %1794 = vmatpush1.msra.mxu0 %v127
    %1795 = vmatprep.subr.mxu0 0.0
    %1796 = vmatpush1.msra.mxu0 %v126
    %1797 = vmatprep.subr.mxu0 0.0
    %1798 = vmatpush1.msra.mxu0 %v125
    %1799 = vmatprep.subr.mxu0 0.0
    %1800 = vmatpush2.msra.mxu0 0.0
    %1801 = vmatprep.subr.mxu0 0.0
    %1802 = vmatpush2.msra.mxu0 0.0
    %1803 = vmatprep.subr.mxu0 0.0
    %1804 = vmatpush2.msra.mxu0 0.0
    %1805 = vmatprep.subr.mxu0 0.0
    %1806 = vmatpush2.msra.mxu0 0.0
    %1807 = vmatprep.subr.mxu0 0.0
    %1808 = vmatpush2.msra.mxu0 0.0
    %1809 = vmatprep.subr.mxu0 0.0
    %1810 = vmatpush2.msra.mxu0 0.0
    %1811 = vmatprep.subr.mxu0 0.0
    %1812 = vmatpush2.msra.mxu0 0.0
    %1813 = vmatprep.subr.mxu0 0.0
    %1814 = vmatpush2.msra.mxu0 0.0
    %1815 = vmatprep.subr.mxu0 0.0
    %1816 = vmatpush2.msra.mxu0 0.0
    %1817 = vmatprep.subr.mxu0 0.0
    %1818 = vmatpush2.msra.mxu0 0.0
    %1819 = vmatprep.subr.mxu0 0.0
    %1820 = vmatpush2.msra.mxu0 0.0
    %1821 = vmatprep.subr.mxu0 0.0
    %1822 = vmatpush2.msra.mxu0 0.0
    %1823 = vmatprep.subr.mxu0 0.0
    %1824 = vmatpush2.msra.mxu0 0.0
    %1825 = vmatprep.subr.mxu0 0.0
    %1826 = vmatpush2.msra.mxu0 0.0
    %1827 = vmatprep.subr.mxu0 0.0
    %1828 = vmatpush2.msra.mxu0 0.0
    %1829 = vmatprep.subr.mxu0 0.0
    %1830 = vmatpush2.msra.mxu0 0.0
    %1831 = vmatprep.mubr.f32.mxu0 0.0
    %1832 = vmatmul.mubr.f32.gmra.mxu0 %v1336
    %v1833 = vpop.f32.mrf.mxu0
    %v1834 = vadd.f32 0.0, %v1833
    %v1835 = vpop.f32.mrf.mxu0
    %1836 = vdwg.mxu0
    %1837 = vmatprep.subr.mxu0 0.0
    %1838 = vmatpush1.msra.mxu0 %v156
    %1839 = vmatprep.subr.mxu0 0.0
    %1840 = vmatpush1.msra.mxu0 %v155
    %1841 = vmatprep.subr.mxu0 0.0
    %1842 = vmatpush1.msra.mxu0 %v154
    %1843 = vmatprep.subr.mxu0 0.0
    %1844 = vmatpush1.msra.mxu0 %v153
    %1845 = vmatprep.subr.mxu0 0.0
    %1846 = vmatpush1.msra.mxu0 %v152
    %1847 = vmatprep.subr.mxu0 0.0
    %1848 = vmatpush1.msra.mxu0 %v151
    %1849 = vmatprep.subr.mxu0 0.0
    %1850 = vmatpush1.msra.mxu0 %v150
    %1851 = vmatprep.subr.mxu0 0.0
    %1852 = vmatpush1.msra.mxu0 %v149
    %1853 = vmatprep.subr.mxu0 0.0
    %1854 = vmatpush1.msra.mxu0 %v148
    %1855 = vmatprep.subr.mxu0 0.0
    %1856 = vmatpush1.msra.mxu0 %v147
    %1857 = vmatprep.subr.mxu0 0.0
    %1858 = vmatpush1.msra.mxu0 %v146
    %1859 = vmatprep.subr.mxu0 0.0
    %1860 = vmatpush1.msra.mxu0 %v145
    %1861 = vmatprep.subr.mxu0 0.0
    %1862 = vmatpush1.msra.mxu0 %v144
    %1863 = vmatprep.subr.mxu0 0.0
    %1864 = vmatpush1.msra.mxu0 %v143
    %1865 = vmatprep.subr.mxu0 0.0
    %1866 = vmatpush1.msra.mxu0 %v142
    %1867 = vmatprep.subr.mxu0 0.0
    %1868 = vmatpush1.msra.mxu0 %v141
    %1869 = vmatprep.subr.mxu0 0.0
    %1870 = vmatpush2.msra.mxu0 0.0
    %1871 = vmatprep.subr.mxu0 0.0
    %1872 = vmatpush2.msra.mxu0 0.0
    %1873 = vmatprep.subr.mxu0 0.0
    %1874 = vmatpush2.msra.mxu0 0.0
    %1875 = vmatprep.subr.mxu0 0.0
    %1876 = vmatpush2.msra.mxu0 0.0
    %1877 = vmatprep.subr.mxu0 0.0
    %1878 = vmatpush2.msra.mxu0 0.0
    %1879 = vmatprep.subr.mxu0 0.0
    %1880 = vmatpush2.msra.mxu0 0.0
    %1881 = vmatprep.subr.mxu0 0.0
    %1882 = vmatpush2.msra.mxu0 0.0
    %1883 = vmatprep.subr.mxu0 0.0
    %1884 = vmatpush2.msra.mxu0 0.0
    %1885 = vmatprep.subr.mxu0 0.0
    %1886 = vmatpush2.msra.mxu0 0.0
    %1887 = vmatprep.subr.mxu0 0.0
    %1888 = vmatpush2.msra.mxu0 0.0
    %1889 = vmatprep.subr.mxu0 0.0
    %1890 = vmatpush2.msra.mxu0 0.0
    %1891 = vmatprep.subr.mxu0 0.0
    %1892 = vmatpush2.msra.mxu0 0.0
    %1893 = vmatprep.subr.mxu0 0.0
    %1894 = vmatpush2.msra.mxu0 0.0
    %1895 = vmatprep.subr.mxu0 0.0
    %1896 = vmatpush2.msra.mxu0 0.0
    %1897 = vmatprep.subr.mxu0 0.0
    %1898 = vmatpush2.msra.mxu0 0.0
    %1899 = vmatprep.subr.mxu0 0.0
    %1900 = vmatpush2.msra.mxu0 0.0
    %1901 = vmatprep.mubr.f32.mxu0 0.0
    %1902 = vmatmul.mubr.f32.gmra.mxu0 %v1338
    %v1903 = vpop.f32.mrf.mxu0
    %v1904 = vadd.f32 0.0, %v1903
    %v1905 = vpop.f32.mrf.mxu0
    %1906 = vdwg.mxu0
    %v1915 = vrot.slane %v1484, 7
    %v1916 = vsel %vm1258, %v1915, %v1414
    %v1917 = vrot.slane %v1554, 6
    %v1918 = vsel %vm1261, %v1917, %v1916
    %v1919 = vrot.slane %v1624, 5
    %v1920 = vsel %vm1264, %v1919, %v1918
    %v1921 = vrot.slane %v1694, 4
    %v1922 = vsel %vm1267, %v1921, %v1920
    %v1923 = vrot.slane %v1764, 3
    %v1924 = vsel %vm1270, %v1923, %v1922
    %v1925 = vrot.slane %v1834, 2
    %v1926 = vsel %vm1273, %v1925, %v1924
    %v1927 = vrot.slane %v1904, 1
    %v1928 = vsel %vm1276, %v1927, %v1926
    %1930 = vst.msk [vmem:[#allocation4] sm:$0xff] %vm288, %v1928
    %1931 = vst [vmem:[#allocation6] sm:$0xff] %v1288
    %v1932 = vsel %vm158, %v1277, 0.0
    %1933 = vst [vmem:[#allocation8] sm:$0xff] %v1932
    %v1934 = vsel %vm158, 1.0, 0.0
    %1935 = vst [vmem:[#allocation9] sm:$0xff] %v1934
    %1936 = vst [vmem:[#allocation11] sm:$0xff] %v1279
    // Predicated region
    $region18: #{tpu_custom_call.1} parent=1 // pred_check
      _
    $region19: #{tpu_custom_call.1} parent=1 // pred_check_branch
      %1938 = sbr.rel (0) target = $region21
    $region20: #{tpu_custom_call.1} parent=1 // pred_region
      %s1940 = ssub.s32 128, 128
      %1941 = vsyncadd [#allocation5], %s1940
      %s1943 = sshll.u32 [#allocation4], 4
      %s1944 = int_to_ptr.vmem [resolvable:$true] %s1943
      %1946 = dma.vmem_to_hbm [thread:$0]  %s1944, 128, %s6, [#allocation5]
    $region21: #{tpu_custom_call.1} parent=1 // pred_fallthru
      _
    // Predicated region
    $region22: #{tpu_custom_call.1} parent=1 // pred_check
      _
    $region23: #{tpu_custom_call.1} parent=1 // pred_check_branch
      %1948 = sbr.rel (0) target = $region25
    $region24: #{tpu_custom_call.1} parent=1 // pred_region
      %s1950 = ssub.s32 128, 128
      %1951 = vsyncadd [#allocation7], %s1950
      %s1953 = sshll.u32 [#allocation6], 4
      %s1954 = int_to_ptr.vmem [resolvable:$true] %s1953
      %1956 = dma.vmem_to_hbm [thread:$0]  %s1954, 128, %s7, [#allocation7]
    $region25: #{tpu_custom_call.1} parent=1 // pred_fallthru
      _
    // Predicated region
    $region26: #{tpu_custom_call.1} parent=1 // pred_check
      _
    $region27: #{tpu_custom_call.1} parent=1 // pred_check_branch
      %1958 = sbr.rel (0) target = $region29
    $region28: #{tpu_custom_call.1} parent=1 // pred_region
      %s1960 = ssub.s32 128, 128
      %1961 = vsyncadd [#allocation7], %s1960
      %s1963 = sshll.u32 [#allocation8], 4
      %s1964 = int_to_ptr.vmem [resolvable:$true] %s1963
      %1966 = dma.vmem_to_hbm [thread:$0]  %s1964, 128, %s8, [#allocation7]
    $region29: #{tpu_custom_call.1} parent=1 // pred_fallthru
      _
    // Predicated region
    $region30: #{tpu_custom_call.1} parent=1 // pred_check
      _
    $region31: #{tpu_custom_call.1} parent=1 // pred_check_branch
      %1968 = sbr.rel (0) target = $region33
    $region32: #{tpu_custom_call.1} parent=1 // pred_region
      %s1970 = ssub.s32 128, 128
      %1971 = vsyncadd [#allocation10], %s1970
      %s1973 = sshll.u32 [#allocation9], 4
      %s1974 = int_to_ptr.vmem [resolvable:$true] %s1973
      %1976 = dma.vmem_to_hbm [thread:$0]  %s1974, 128, %s9, [#allocation10]
    $region33: #{tpu_custom_call.1} parent=1 // pred_fallthru
      _
    // Predicated region
    $region34: #{tpu_custom_call.1} parent=1 // pred_check
      _
    $region35: #{tpu_custom_call.1} parent=1 // pred_check_branch
      %1978 = sbr.rel (0) target = $region37
    $region36: #{tpu_custom_call.1} parent=1 // pred_region
      %s1979 = sld [smem:[#allocation3]]
      %s1981 = ssub.s32 128, 128
      %1982 = vsyncadd [#allocation10], %s1981
      %s1983 = smul.addr %s1979, 128
      %s1984 = scalar_lea.hbm %s10, %s1983
      %s1986 = sshll.u32 [#allocation11], 4
      %s1987 = int_to_ptr.vmem [resolvable:$true] %s1986
      %1989 = dma.vmem_to_hbm [thread:$0]  %s1987, 128, %s1984, [#allocation10]
    $region37: #{tpu_custom_call.1} parent=1 // pred_fallthru
      _
    // Predicated region
    $region38: #{tpu_custom_call.1} parent=1 // pred_check
      _
    $region39: #{tpu_custom_call.1} parent=1 // pred_check_branch
      %1991 = sbr.rel (0) target = $region41
    $region40: #{tpu_custom_call.1} parent=1 // pred_region
      %1992 = dma.done [#allocation5], 128
    $region41: #{tpu_custom_call.1} parent=1 // pred_fallthru
      _
    // Predicated region
    $region42: #{tpu_custom_call.1} parent=1 // pred_check
      _
    $region43: #{tpu_custom_call.1} parent=1 // pred_check_branch
      %1994 = sbr.rel (0) target = $region45
    $region44: #{tpu_custom_call.1} parent=1 // pred_region
      %1995 = dma.done [#allocation7], 128
    $region45: #{tpu_custom_call.1} parent=1 // pred_fallthru
      _
    // Predicated region
    $region46: #{tpu_custom_call.1} parent=1 // pred_check
      _
    $region47: #{tpu_custom_call.1} parent=1 // pred_check_branch
      %1997 = sbr.rel (0) target = $region49
    $region48: #{tpu_custom_call.1} parent=1 // pred_region
      %1998 = dma.done [#allocation7], 128
    $region49: #{tpu_custom_call.1} parent=1 // pred_fallthru
      _
    // Predicated region
    $region50: #{tpu_custom_call.1} parent=1 // pred_check
      _
    $region51: #{tpu_custom_call.1} parent=1 // pred_check_branch
      %2000 = sbr.rel (0) target = $region53
    $region52: #{tpu_custom_call.1} parent=1 // pred_region
      %2001 = dma.done [#allocation10], 128
    $region53: #{tpu_custom_call.1} parent=1 // pred_fallthru
      _
    // Predicated region
    $region54: #{tpu_custom_call.1} parent=1 // pred_check
      _
    $region55: #{tpu_custom_call.1} parent=1 // pred_check_branch
      %2003 = sbr.rel (0) target = $region57
    $region56: #{tpu_custom_call.1} parent=1 // pred_region
      %2004 = dma.done [#allocation10], 128
    $region57: #{tpu_custom_call.1} parent=1 // pred_fallthru
      _
    %2005 = vsyncpa [#allocation5], 1
    %2006 = vsyncpa [#allocation7], 1
    %2007 = vsyncpa [#allocation10], 1

</llo_original>
